<compile_context>
chip_gen: v5e
topology: v5e:2x2
jax: 0.10.0
libtpu: 0.0.40
codegen_flags: <defaults>
</compile_context>

<pallas_src>
import jax
import jax.numpy as jnp
from jax.experimental import pallas as pl
from jax.experimental.pallas import tpu as pltpu

_LN_EPS = 1e-5
_SQRT_2_OVER_PI = 0.7978845608028654


def _gelu(z):
    # tanh-approximation GeLU
    return 0.5 * z * (1.0 + jnp.tanh(_SQRT_2_OVER_PI * (z + 0.044715 * z * z * z)))


def _gelu_layernorm(z, gamma, beta):
    """GeLU -> LayerNorm over the last axis.  All f32 VPU math."""
    g = _gelu(z)
    mean = jnp.mean(g, axis=-1, keepdims=True)
    var = jnp.mean(jnp.square(g - mean), axis=-1, keepdims=True)
    return (g - mean) * jax.lax.rsqrt(var + _LN_EPS) * gamma + beta


def _aggregate(a3, z2, bt, n, cdtype):
    """agg[b*n+i, :] = sum_j A[b, i, j] * z[b*n+j, :]  (neighbourhood sum)."""
    fc = z2.shape[-1]
    z3 = z2.reshape(bt, n, fc)                 # layout-preserving (n % 8 == 0)
    if n <= 16:
        # Tiny graphs: VPU broadcast + accumulate; keep the MXU for the big dots.
        acc = a3[:, :, 0:1] * z3[:, 0:1, :]
        for j in range(1, n):
            acc = acc + a3[:, :, j:j + 1] * z3[:, j:j + 1, :]
    else:
        acc = jnp.einsum("bij,bjf->bif", a3.astype(cdtype), z3.astype(cdtype),
                         preferred_element_type=jnp.float32)
    return acc.reshape(bt * n, fc)


def _make_gin_kernel(n_layers, bt, npad, conv_dims, fout, cdtype):
    """Fused kernel: all GIN convs + all prediction heads + residual sum."""

    def kernel(x_ref, a_ref, eps_ref, *rest):
        o_ref, ret_sc, h_sc = rest[-3], rest[-2], rest[-1]
        prefs = rest[:-3]

        a3 = a_ref[...].astype(jnp.float32)            # (bt, npad, npad)
        h = x_ref[...].astype(jnp.float32)             # (bt*npad, Fin)

        for li in range(n_layers):
            fin, fc = conv_dims[li]
            if li > 0:
                h = h_sc[:, :fin]                      # round-trip through VMEM
            wcat = prefs[2 * li][...]                  # (fin, fc + fout), cdtype
            sm = prefs[2 * li + 1][...]                # (6, max(fc, fout)) f32

            # One wide MXU push: fused [conv | prediction-head] weights.
            z = jnp.dot(h.astype(cdtype), wcat,
                        preferred_element_type=jnp.float32)
            z_conv = z[:, :fc]
            z_head = z[:, fc:fc + fout]

            # Prediction head li acts on this layer's *input*.
            head = _gelu_layernorm(z_head + sm[3:4, :fout],
                                   sm[4:5, :fout], sm[5:6, :fout])
            if li == 0:
                ret_sc[...] = head
            else:
                ret_sc[...] = ret_sc[...] + head

            # GIN conv, reordered: (h + (1+eps) A h) W == hW + (1+eps) A (hW)
            agg = _aggregate(a3, z_conv, bt, npad, cdtype)
            zc = z_conv + (1.0 + eps_ref[li]) * agg + sm[0:1, :fc]
            h_sc[:, :fc] = _gelu_layernorm(zc, sm[1:2, :fc], sm[2:3, :fc])

        # Final prediction head on the last conv output.
        fc_last = conv_dims[-1][1]
        wf = prefs[2 * n_layers][...]
        smf = prefs[2 * n_layers + 1][...]
        zf = jnp.dot(h_sc[:, :fc_last].astype(cdtype), wf,
                     preferred_element_type=jnp.float32)
        ret_sc[...] = ret_sc[...] + _gelu_layernorm(zf + smf[0:1],
                                                    smf[1:2], smf[2:3])
        o_ref[...] = ret_sc[...].astype(o_ref.dtype)

    return kernel


def _round_up(x, m):
    return -(-x // m) * m


def _padded_vmem_bytes(shape, itemsize):
    r, c = shape
    return _round_up(r, 8) * _round_up(c, 128) * itemsize


def _physical_vmem_bytes():
    try:
        info = pltpu.get_tpu_info()
        return int(getattr(info, "vmem_capacity_bytes", 64 << 20))
    except Exception:
        return 64 << 20


def gin_forward(X, A, params, *, compute_dtype=jnp.bfloat16, batch_tile=None):
    """GIN.forward (eval mode: dropout = identity) — one fused pallas_call."""
    B, N, Fin = X.shape
    n_layers = len(params["convs"])
    head_dims = [lp["W"].shape[1] for lp in params["lps"]]
    assert all(d == head_dims[0] for d in head_dims), (
        "residual sum requires every prediction head to emit the same width")
    Fout = head_dims[0]
    conv_dims = [(c["W"].shape[0], c["W"].shape[1]) for c in params["convs"]]

    # ---- pack parameters: one fused [W_conv | W_head] matrix + one small-param
    #      block per layer ----------------------------------------------------
    wcats, smalls = [], []
    for li in range(n_layers):
        c, lp = params["convs"][li], params["lps"][li]
        fc = c["W"].shape[1]
        wcats.append(jnp.concatenate([c["W"], lp["W"]], axis=1).astype(compute_dtype))
        w = max(fc, Fout)
        rows = []
        for arr, width in ((c["b"], fc), (c["gamma"], fc), (c["beta"], fc),
                           (lp["b"], Fout), (lp["gamma"], Fout), (lp["beta"], Fout)):
            row = jnp.zeros((1, w), jnp.float32)
            row = row.at[:, :width].set(arr.reshape(1, width).astype(jnp.float32))
            rows.append(row)
        smalls.append(jnp.concatenate(rows, axis=0))          # (6, max(fc, Fout))
    lp_f = params["lps"][-1]
    w_final = lp_f["W"].astype(compute_dtype)
    small_final = jnp.concatenate(
        [lp_f["b"].reshape(1, Fout), lp_f["gamma"].reshape(1, Fout),
         lp_f["beta"].reshape(1, Fout)], axis=0).astype(jnp.float32)
    eps_vec = jnp.concatenate(
        [c["eps"].reshape(-1) for c in params["convs"]]).astype(jnp.float32)

    # ---- pad nodes to a sublane multiple so 3D<->2D views stay layout-preserving
    Np = _round_up(N, 8)
    if Np != N:
        X = jnp.pad(X, ((0, 0), (0, Np - N), (0, 0)))
        A = jnp.pad(A, ((0, 0), (0, Np - N), (0, Np - N)))

    # ---- per-generation VMEM budgeting + batch-tile choice --------------------
    itemsize = jnp.dtype(compute_dtype).itemsize
    weight_bytes = sum(_padded_vmem_bytes(w.shape, itemsize) for w in wcats)
    weight_bytes += _padded_vmem_bytes(w_final.shape, itemsize)
    weight_bytes += sum(_padded_vmem_bytes(s.shape, 4) for s in smalls)
    weight_bytes += _padded_vmem_bytes(small_final.shape, 4)
    f_max = max([Fin, Fout] + [fc for _, fc in conv_dims])

    def vmem_estimate(bt):
        m = bt * Np
        lane = lambda f: _round_up(f, 128)
        x_blk = m * lane(Fin) * 4
        a_blk = bt * Np * lane(Np) * 4
        o_blk = m * lane(Fout) * 4
        scratch = m * (lane(Fout) + lane(f_max)) * 4
        live = 6 * m * lane(f_max + Fout) * 4          # z / agg / LN temporaries
        return 2 * weight_bytes + 2 * (x_blk + a_blk + o_blk) + scratch + live

    phys = _physical_vmem_bytes()
    budget = min(int(phys * 0.5), 48 << 20)
    if batch_tile is None:
        batch_tile = max(1, min(B, max(1, 512 // Np)))  # target ~512 rows / step
        if B >= 2:                                       # >=2 grid steps (v7x 2 TCs)
            batch_tile = min(batch_tile, -(-B // 2))
        while batch_tile > 1 and vmem_estimate(batch_tile) > budget:
            batch_tile -= 1
    vmem_limit = min(int(phys * 3 // 4),
                     max(2 * vmem_estimate(batch_tile), 32 << 20))

    Bp = _round_up(B, batch_tile)
    if Bp != B:
        X = jnp.pad(X, ((0, Bp - B), (0, 0), (0, 0)))
        A = jnp.pad(A, ((0, Bp - B), (0, 0), (0, 0)))
    X2 = X.reshape(Bp * Np, Fin)                         # flat, 2-D node-row slab

    m_tile = batch_tile * Np
    grid = (Bp // batch_tile,)

    in_specs = [
        pl.BlockSpec((m_tile, Fin), lambda i: (i, 0)),
        pl.BlockSpec((batch_tile, Np, Np), lambda i: (i, 0, 0)),
        pl.BlockSpec(memory_space=pltpu.MemorySpace.SMEM),      # eps vector
    ]
    flat_params = []
    for li in range(n_layers):
        for arr in (wcats[li], smalls[li]):
            flat_params.append(arr)
            in_specs.append(pl.BlockSpec(arr.shape, lambda i: (0, 0)))
    for arr in (w_final, small_final):
        flat_params.append(arr)
        in_specs.append(pl.BlockSpec(arr.shape, lambda i: (0, 0)))

    kernel = _make_gin_kernel(n_layers, batch_tile, Np, conv_dims, Fout,
                              compute_dtype)
    out = pl.pallas_call(
        kernel,
        out_shape=jax.ShapeDtypeStruct((Bp * Np, Fout), jnp.float32),
        grid=grid,
        in_specs=in_specs,
        out_specs=pl.BlockSpec((m_tile, Fout), lambda i: (i, 0)),
        scratch_shapes=[
            pltpu.VMEM((m_tile, Fout), jnp.float32),     # ret accumulator
            pltpu.VMEM((m_tile, f_max), jnp.float32),    # h round-trip
        ],
        compiler_params=pltpu.CompilerParams(
            dimension_semantics=("parallel",),
            vmem_limit_bytes=int(vmem_limit),
        ),
    )(X2, A, eps_vec, *flat_params)
    return out.reshape(Bp, Np, Fout)[:B, :N]


def init_params(key, input_dim, hidden_dims, n_layers):
    """Deterministic synthetic init (PyTorch-like uniform for Linear weights)."""
    def linear_block(key, fin, fout):
        kw, kb = jax.random.split(key)
        bound = 1.0 / jnp.sqrt(fin)
        return dict(
            W=jax.random.uniform(kw, (fin, fout), jnp.float32, -bound, bound),
            b=jax.random.uniform(kb, (1, fout), jnp.float32, -bound, bound),
            gamma=jnp.ones((1, fout), jnp.float32),
            beta=jnp.zeros((1, fout), jnp.float32),
        )

    keys = jax.random.split(key, 2 * n_layers + 1)
    convs, lps = [], []
    for i in range(n_layers):
        fin = input_dim if i == 0 else hidden_dims[i - 1]
        blk = linear_block(keys[i], fin, hidden_dims[i])
        blk["eps"] = jnp.zeros((1,), jnp.float32)    # nn.Parameter(torch.zeros(1))
        convs.append(blk)
        lps.append(linear_block(keys[n_layers + i], fin, hidden_dims[i]))
    lps.append(linear_block(keys[-1], hidden_dims[-2], hidden_dims[-1]))
    return dict(convs=convs, lps=lps)


# ----------------------- pure-JAX reference for checking -----------------------
def _ref_head(h, lp):
    z = h @ lp["W"] + lp["b"][0]
    g = _gelu(z)
    mean = jnp.mean(g, axis=-1, keepdims=True)
    var = jnp.mean((g - mean) ** 2, axis=-1, keepdims=True)
    return (g - mean) * jax.lax.rsqrt(var + _LN_EPS) * lp["gamma"][0] + lp["beta"][0]


def gin_forward_ref(X, A, params):
    hidden_states = [X]
    for conv in params["convs"]:
        X = X + (1.0 + conv["eps"][0]) * jnp.einsum("bij,bjf->bif", A, X)
        X = _ref_head(X, conv)
        hidden_states.append(X)
    ret = 0.0
    for lp, h in zip(params["lps"], hidden_states):
        ret = ret + _ref_head(h, lp)
    return ret


if __name__ == "__main__":
    batch, nodes, input_dim = 2, 8, 16
    hidden_dims = [32, 32]            # last two equal (required by the module's sum)
    n_layers = 2

    key = jax.random.PRNGKey(0)
    kx, ka, kp = jax.random.split(key, 3)

    X = jax.random.normal(kx, (batch, nodes, input_dim), jnp.float32)
    # symmetric 0/1 adjacency
    A_raw = (jax.random.uniform(ka, (batch, nodes, nodes)) > 0.5).astype(jnp.float32)
    A = jnp.maximum(A_raw, jnp.swapaxes(A_raw, 1, 2))

    params = init_params(kp, input_dim, hidden_dims, n_layers)
    # exercise the eps path with deterministic nonzero values
    for li, conv in enumerate(params["convs"]):
        conv["eps"] = jnp.full((1,), 0.05 * (li + 1), jnp.float32)

    ref = gin_forward_ref(X, A, params)

    # strict structural check with f32 matmul inputs
    out_f32 = jax.block_until_ready(
        gin_forward(X, A, params, compute_dtype=jnp.float32))
    assert out_f32.shape == (batch, nodes, hidden_dims[-1])
    assert jnp.allclose(out_f32, ref, atol=1e-3, rtol=1e-3), "f32 kernel mismatch"

    # fast path: bf16 MXU inputs, f32 accumulation / VPU math
    out_bf16 = jax.block_until_ready(
        gin_forward(X, A, params, compute_dtype=jnp.bfloat16))
    assert out_bf16.shape == (batch, nodes, hidden_dims[-1])
    assert jnp.all(jnp.isfinite(out_bf16))
    assert jnp.allclose(out_bf16, ref, atol=1e-1, rtol=5e-2), "bf16 kernel mismatch"

    print("KERNEL_OK")
</pallas_src>

<mosaic_0001>
module attributes {stable_mosaic.version = 11 : i64} {
  func.func @kernel(%arg0: i32, %arg1: memref<8x16xf32, #tpu.memory_space<vmem>>, %arg2: memref<1x8x8xf32, #tpu.memory_space<vmem>>, %arg3: memref<2xf32, #tpu.memory_space<smem>>, %arg4: memref<16x64xf32, #tpu.memory_space<vmem>>, %arg5: memref<6x32xf32, #tpu.memory_space<vmem>>, %arg6: memref<32x64xf32, #tpu.memory_space<vmem>>, %arg7: memref<6x32xf32, #tpu.memory_space<vmem>>, %arg8: memref<32x32xf32, #tpu.memory_space<vmem>>, %arg9: memref<3x32xf32, #tpu.memory_space<vmem>>, %arg10: memref<8x32xf32, #tpu.memory_space<vmem>>, %arg11: memref<8x32xf32, #tpu.memory_space<vmem>>, %arg12: memref<8x32xf32, #tpu.memory_space<vmem>>) attributes {dimension_semantics = [#tpu.dimension_semantics<parallel>], iteration_bounds = array<i64: 2>, scalar_prefetch = 0 : i64, scratch_operands = 2 : i64, tpu.core_type = #tpu.core_type<tc>, window_params = [{transform_indices = @transform_0, window_bounds = array<i64: 8, 16>}, {transform_indices = @transform_1, window_bounds = array<i64: 1, 8, 8>}, {transform_indices = @transform_2, window_bounds = array<i64: 2>}, {pipeline_mode = #tpu.pipeline_mode<synchronous>, transform_indices = @transform_3, window_bounds = array<i64: 16, 64>}, {pipeline_mode = #tpu.pipeline_mode<synchronous>, transform_indices = @transform_4, window_bounds = array<i64: 6, 32>}, {pipeline_mode = #tpu.pipeline_mode<synchronous>, transform_indices = @transform_5, window_bounds = array<i64: 32, 64>}, {pipeline_mode = #tpu.pipeline_mode<synchronous>, transform_indices = @transform_6, window_bounds = array<i64: 6, 32>}, {pipeline_mode = #tpu.pipeline_mode<synchronous>, transform_indices = @transform_7, window_bounds = array<i64: 32, 32>}, {pipeline_mode = #tpu.pipeline_mode<synchronous>, transform_indices = @transform_8, window_bounds = array<i64: 3, 32>}, {transform_indices = @transform_9, window_bounds = array<i64: 8, 32>}]} {
    %c0 = arith.constant 0 : index
    %c0_0 = arith.constant 0 : index
    %c0_1 = arith.constant 0 : index
    %0 = vector.load %arg2[%c0, %c0_0, %c0_1] : memref<1x8x8xf32, #tpu.memory_space<vmem>>, vector<1x8x8xf32>
    %c0_2 = arith.constant 0 : index
    %c0_3 = arith.constant 0 : index
    %1 = vector.load %arg1[%c0_2, %c0_3] : memref<8x16xf32, #tpu.memory_space<vmem>>, vector<8x16xf32>
    %c0_4 = arith.constant 0 : index
    %c0_5 = arith.constant 0 : index
    %2 = vector.load %arg4[%c0_4, %c0_5] : memref<16x64xf32, #tpu.memory_space<vmem>>, vector<16x64xf32>
    %c0_6 = arith.constant 0 : index
    %c0_7 = arith.constant 0 : index
    %3 = vector.load %arg5[%c0_6, %c0_7] : memref<6x32xf32, #tpu.memory_space<vmem>>, vector<6x32xf32>
    %cst = arith.constant dense<0.000000e+00> : vector<8x64xf32>
    %4 = tpu.matmul %1, %2, %cst {dimension_numbers = #tpu.dot_dimension_numbers<[1], [0], [0], [1], [0, 0, 1, 1], [], []>} : vector<8x16xf32>, vector<16x64xf32>, vector<8x64xf32> -> vector<8x64xf32>
    %5 = vector.extract_strided_slice %4 {offsets = [0, 0], sizes = [8, 32], strides = [1, 1]} : vector<8x64xf32> to vector<8x32xf32>
    %6 = vector.extract_strided_slice %4 {offsets = [0, 32], sizes = [8, 32], strides = [1, 1]} : vector<8x64xf32> to vector<8x32xf32>
    %7 = vector.extract_strided_slice %3 {offsets = [3, 0], sizes = [1, 32], strides = [1, 1]} : vector<6x32xf32> to vector<1x32xf32>
    %8 = vector.broadcast %7 : vector<1x32xf32> to vector<8x32xf32>
    %9 = arith.addf %6, %8 : vector<8x32xf32>
    %10 = vector.extract_strided_slice %3 {offsets = [4, 0], sizes = [1, 32], strides = [1, 1]} : vector<6x32xf32> to vector<1x32xf32>
    %11 = vector.extract_strided_slice %3 {offsets = [5, 0], sizes = [1, 32], strides = [1, 1]} : vector<6x32xf32> to vector<1x32xf32>
    %cst_8 = arith.constant 5.000000e-01 : f32
    %12 = vector.broadcast %cst_8 : f32 to vector<8x32xf32>
    %13 = arith.mulf %12, %9 : vector<8x32xf32>
    %cst_9 = arith.constant 4.471500e-02 : f32
    %14 = vector.broadcast %cst_9 : f32 to vector<8x32xf32>
    %15 = arith.mulf %14, %9 : vector<8x32xf32>
    %16 = arith.mulf %15, %9 : vector<8x32xf32>
    %17 = arith.mulf %16, %9 : vector<8x32xf32>
    %18 = arith.addf %9, %17 : vector<8x32xf32>
    %cst_10 = arith.constant 0.797884583 : f32
    %19 = vector.broadcast %cst_10 : f32 to vector<8x32xf32>
    %20 = arith.mulf %19, %18 : vector<8x32xf32>
    %21 = math.tanh %20 : vector<8x32xf32>
    %cst_11 = arith.constant 1.000000e+00 : f32
    %22 = vector.broadcast %cst_11 : f32 to vector<8x32xf32>
    %23 = arith.addf %22, %21 : vector<8x32xf32>
    %24 = arith.mulf %13, %23 : vector<8x32xf32>
    %cst_12 = arith.constant dense<0.000000e+00> : vector<8xf32>
    %25 = vector.multi_reduction <add>, %24, %cst_12 [1] : vector<8x32xf32> to vector<8xf32>
    %26 = vector.shape_cast %25 : vector<8xf32> to vector<8x1xf32>
    %cst_13 = arith.constant 3.200000e+01 : f32
    %27 = vector.broadcast %cst_13 : f32 to vector<8x1xf32>
    %28 = arith.divf %26, %27 : vector<8x1xf32>
    %29 = vector.broadcast %28 : vector<8x1xf32> to vector<8x32xf32>
    %30 = arith.subf %24, %29 : vector<8x32xf32>
    %31 = arith.mulf %30, %30 : vector<8x32xf32>
    %cst_14 = arith.constant dense<0.000000e+00> : vector<8xf32>
    %32 = vector.multi_reduction <add>, %31, %cst_14 [1] : vector<8x32xf32> to vector<8xf32>
    %33 = vector.shape_cast %32 : vector<8xf32> to vector<8x1xf32>
    %cst_15 = arith.constant 3.200000e+01 : f32
    %34 = vector.broadcast %cst_15 : f32 to vector<8x1xf32>
    %35 = arith.divf %33, %34 : vector<8x1xf32>
    %36 = vector.broadcast %28 : vector<8x1xf32> to vector<8x32xf32>
    %37 = arith.subf %24, %36 : vector<8x32xf32>
    %cst_16 = arith.constant 9.99999974E-6 : f32
    %38 = vector.broadcast %cst_16 : f32 to vector<8x1xf32>
    %39 = arith.addf %35, %38 : vector<8x1xf32>
    %40 = math.rsqrt %39 : vector<8x1xf32>
    %41 = vector.broadcast %40 : vector<8x1xf32> to vector<8x32xf32>
    %42 = arith.mulf %37, %41 : vector<8x32xf32>
    %43 = vector.broadcast %10 : vector<1x32xf32> to vector<8x32xf32>
    %44 = arith.mulf %42, %43 : vector<8x32xf32>
    %45 = vector.broadcast %11 : vector<1x32xf32> to vector<8x32xf32>
    %46 = arith.addf %44, %45 : vector<8x32xf32>
    %c0_17 = arith.constant 0 : index
    %c0_18 = arith.constant 0 : index
    %47 = vector.load %arg11[%c0_17, %c0_18] : memref<8x32xf32, #tpu.memory_space<vmem>>, vector<8x32xf32>
    tpu.vector_store %arg11[%c0_17, %c0_18], %46 {strides = array<i32>} : memref<8x32xf32, #tpu.memory_space<vmem>>, vector<8x32xf32>,
    %48 = vector.shape_cast %5 : vector<8x32xf32> to vector<1x8x32xf32>
    %49 = vector.extract_strided_slice %0 {offsets = [0, 0, 0], sizes = [1, 8, 1], strides = [1, 1, 1]} : vector<1x8x8xf32> to vector<1x8x1xf32>
    %50 = vector.extract_strided_slice %48 {offsets = [0, 0, 0], sizes = [1, 1, 32], strides = [1, 1, 1]} : vector<1x8x32xf32> to vector<1x1x32xf32>
    %51 = vector.broadcast %49 : vector<1x8x1xf32> to vector<1x8x32xf32>
    %52 = vector.broadcast %50 : vector<1x1x32xf32> to vector<1x8x32xf32>
    %53 = arith.mulf %51, %52 : vector<1x8x32xf32>
    %54 = vector.extract_strided_slice %0 {offsets = [0, 0, 1], sizes = [1, 8, 1], strides = [1, 1, 1]} : vector<1x8x8xf32> to vector<1x8x1xf32>
    %55 = vector.extract_strided_slice %48 {offsets = [0, 1, 0], sizes = [1, 1, 32], strides = [1, 1, 1]} : vector<1x8x32xf32> to vector<1x1x32xf32>
    %56 = vector.broadcast %54 : vector<1x8x1xf32> to vector<1x8x32xf32>
    %57 = vector.broadcast %55 : vector<1x1x32xf32> to vector<1x8x32xf32>
    %58 = arith.mulf %56, %57 : vector<1x8x32xf32>
    %59 = arith.addf %53, %58 : vector<1x8x32xf32>
    %60 = vector.extract_strided_slice %0 {offsets = [0, 0, 2], sizes = [1, 8, 1], strides = [1, 1, 1]} : vector<1x8x8xf32> to vector<1x8x1xf32>
    %61 = vector.extract_strided_slice %48 {offsets = [0, 2, 0], sizes = [1, 1, 32], strides = [1, 1, 1]} : vector<1x8x32xf32> to vector<1x1x32xf32>
    %62 = vector.broadcast %60 : vector<1x8x1xf32> to vector<1x8x32xf32>
    %63 = vector.broadcast %61 : vector<1x1x32xf32> to vector<1x8x32xf32>
    %64 = arith.mulf %62, %63 : vector<1x8x32xf32>
    %65 = arith.addf %59, %64 : vector<1x8x32xf32>
    %66 = vector.extract_strided_slice %0 {offsets = [0, 0, 3], sizes = [1, 8, 1], strides = [1, 1, 1]} : vector<1x8x8xf32> to vector<1x8x1xf32>
    %67 = vector.extract_strided_slice %48 {offsets = [0, 3, 0], sizes = [1, 1, 32], strides = [1, 1, 1]} : vector<1x8x32xf32> to vector<1x1x32xf32>
    %68 = vector.broadcast %66 : vector<1x8x1xf32> to vector<1x8x32xf32>
    %69 = vector.broadcast %67 : vector<1x1x32xf32> to vector<1x8x32xf32>
    %70 = arith.mulf %68, %69 : vector<1x8x32xf32>
    %71 = arith.addf %65, %70 : vector<1x8x32xf32>
    %72 = vector.extract_strided_slice %0 {offsets = [0, 0, 4], sizes = [1, 8, 1], strides = [1, 1, 1]} : vector<1x8x8xf32> to vector<1x8x1xf32>
    %73 = vector.extract_strided_slice %48 {offsets = [0, 4, 0], sizes = [1, 1, 32], strides = [1, 1, 1]} : vector<1x8x32xf32> to vector<1x1x32xf32>
    %74 = vector.broadcast %72 : vector<1x8x1xf32> to vector<1x8x32xf32>
    %75 = vector.broadcast %73 : vector<1x1x32xf32> to vector<1x8x32xf32>
    %76 = arith.mulf %74, %75 : vector<1x8x32xf32>
    %77 = arith.addf %71, %76 : vector<1x8x32xf32>
    %78 = vector.extract_strided_slice %0 {offsets = [0, 0, 5], sizes = [1, 8, 1], strides = [1, 1, 1]} : vector<1x8x8xf32> to vector<1x8x1xf32>
    %79 = vector.extract_strided_slice %48 {offsets = [0, 5, 0], sizes = [1, 1, 32], strides = [1, 1, 1]} : vector<1x8x32xf32> to vector<1x1x32xf32>
    %80 = vector.broadcast %78 : vector<1x8x1xf32> to vector<1x8x32xf32>
    %81 = vector.broadcast %79 : vector<1x1x32xf32> to vector<1x8x32xf32>
    %82 = arith.mulf %80, %81 : vector<1x8x32xf32>
    %83 = arith.addf %77, %82 : vector<1x8x32xf32>
    %84 = vector.extract_strided_slice %0 {offsets = [0, 0, 6], sizes = [1, 8, 1], strides = [1, 1, 1]} : vector<1x8x8xf32> to vector<1x8x1xf32>
    %85 = vector.extract_strided_slice %48 {offsets = [0, 6, 0], sizes = [1, 1, 32], strides = [1, 1, 1]} : vector<1x8x32xf32> to vector<1x1x32xf32>
    %86 = vector.broadcast %84 : vector<1x8x1xf32> to vector<1x8x32xf32>
    %87 = vector.broadcast %85 : vector<1x1x32xf32> to vector<1x8x32xf32>
    %88 = arith.mulf %86, %87 : vector<1x8x32xf32>
    %89 = arith.addf %83, %88 : vector<1x8x32xf32>
    %90 = vector.extract_strided_slice %0 {offsets = [0, 0, 7], sizes = [1, 8, 1], strides = [1, 1, 1]} : vector<1x8x8xf32> to vector<1x8x1xf32>
    %91 = vector.extract_strided_slice %48 {offsets = [0, 7, 0], sizes = [1, 1, 32], strides = [1, 1, 1]} : vector<1x8x32xf32> to vector<1x1x32xf32>
    %92 = vector.broadcast %90 : vector<1x8x1xf32> to vector<1x8x32xf32>
    %93 = vector.broadcast %91 : vector<1x1x32xf32> to vector<1x8x32xf32>
    %94 = arith.mulf %92, %93 : vector<1x8x32xf32>
    %95 = arith.addf %89, %94 : vector<1x8x32xf32>
    %96 = vector.shape_cast %95 : vector<1x8x32xf32> to vector<8x32xf32>
    %c0_19 = arith.constant 0 : index
    %97 = memref.load %arg3[%c0_19] : memref<2xf32, #tpu.memory_space<smem>>
    %cst_20 = arith.constant 1.000000e+00 : f32
    %98 = arith.addf %cst_20, %97 : f32
    %99 = vector.broadcast %98 : f32 to vector<8x32xf32>
    %100 = arith.mulf %99, %96 : vector<8x32xf32>
    %101 = arith.addf %5, %100 : vector<8x32xf32>
    %102 = vector.extract_strided_slice %3 {offsets = [0, 0], sizes = [1, 32], strides = [1, 1]} : vector<6x32xf32> to vector<1x32xf32>
    %103 = vector.broadcast %102 : vector<1x32xf32> to vector<8x32xf32>
    %104 = arith.addf %101, %103 : vector<8x32xf32>
    %105 = vector.extract_strided_slice %3 {offsets = [1, 0], sizes = [1, 32], strides = [1, 1]} : vector<6x32xf32> to vector<1x32xf32>
    %106 = vector.extract_strided_slice %3 {offsets = [2, 0], sizes = [1, 32], strides = [1, 1]} : vector<6x32xf32> to vector<1x32xf32>
    %cst_21 = arith.constant 5.000000e-01 : f32
    %107 = vector.broadcast %cst_21 : f32 to vector<8x32xf32>
    %108 = arith.mulf %107, %104 : vector<8x32xf32>
    %cst_22 = arith.constant 4.471500e-02 : f32
    %109 = vector.broadcast %cst_22 : f32 to vector<8x32xf32>
    %110 = arith.mulf %109, %104 : vector<8x32xf32>
    %111 = arith.mulf %110, %104 : vector<8x32xf32>
    %112 = arith.mulf %111, %104 : vector<8x32xf32>
    %113 = arith.addf %104, %112 : vector<8x32xf32>
    %cst_23 = arith.constant 0.797884583 : f32
    %114 = vector.broadcast %cst_23 : f32 to vector<8x32xf32>
    %115 = arith.mulf %114, %113 : vector<8x32xf32>
    %116 = math.tanh %115 : vector<8x32xf32>
    %cst_24 = arith.constant 1.000000e+00 : f32
    %117 = vector.broadcast %cst_24 : f32 to vector<8x32xf32>
    %118 = arith.addf %117, %116 : vector<8x32xf32>
    %119 = arith.mulf %108, %118 : vector<8x32xf32>
    %cst_25 = arith.constant dense<0.000000e+00> : vector<8xf32>
    %120 = vector.multi_reduction <add>, %119, %cst_25 [1] : vector<8x32xf32> to vector<8xf32>
    %121 = vector.shape_cast %120 : vector<8xf32> to vector<8x1xf32>
    %cst_26 = arith.constant 3.200000e+01 : f32
    %122 = vector.broadcast %cst_26 : f32 to vector<8x1xf32>
    %123 = arith.divf %121, %122 : vector<8x1xf32>
    %124 = vector.broadcast %123 : vector<8x1xf32> to vector<8x32xf32>
    %125 = arith.subf %119, %124 : vector<8x32xf32>
    %126 = arith.mulf %125, %125 : vector<8x32xf32>
    %cst_27 = arith.constant dense<0.000000e+00> : vector<8xf32>
    %127 = vector.multi_reduction <add>, %126, %cst_27 [1] : vector<8x32xf32> to vector<8xf32>
    %128 = vector.shape_cast %127 : vector<8xf32> to vector<8x1xf32>
    %cst_28 = arith.constant 3.200000e+01 : f32
    %129 = vector.broadcast %cst_28 : f32 to vector<8x1xf32>
    %130 = arith.divf %128, %129 : vector<8x1xf32>
    %131 = vector.broadcast %123 : vector<8x1xf32> to vector<8x32xf32>
    %132 = arith.subf %119, %131 : vector<8x32xf32>
    %cst_29 = arith.constant 9.99999974E-6 : f32
    %133 = vector.broadcast %cst_29 : f32 to vector<8x1xf32>
    %134 = arith.addf %130, %133 : vector<8x1xf32>
    %135 = math.rsqrt %134 : vector<8x1xf32>
    %136 = vector.broadcast %135 : vector<8x1xf32> to vector<8x32xf32>
    %137 = arith.mulf %132, %136 : vector<8x32xf32>
    %138 = vector.broadcast %105 : vector<1x32xf32> to vector<8x32xf32>
    %139 = arith.mulf %137, %138 : vector<8x32xf32>
    %140 = vector.broadcast %106 : vector<1x32xf32> to vector<8x32xf32>
    %141 = arith.addf %139, %140 : vector<8x32xf32>
    %c0_30 = arith.constant 0 : index
    %c0_31 = arith.constant 0 : index
    %142 = vector.load %arg12[%c0_30, %c0_31] : memref<8x32xf32, #tpu.memory_space<vmem>>, vector<8x32xf32>
    tpu.vector_store %arg12[%c0_30, %c0_31], %141 {strides = array<i32>} : memref<8x32xf32, #tpu.memory_space<vmem>>, vector<8x32xf32>,
    %c0_32 = arith.constant 0 : index
    %c0_33 = arith.constant 0 : index
    %143 = vector.load %arg12[%c0_32, %c0_33] : memref<8x32xf32, #tpu.memory_space<vmem>>, vector<8x32xf32>
    %c0_34 = arith.constant 0 : index
    %c0_35 = arith.constant 0 : index
    %144 = vector.load %arg6[%c0_34, %c0_35] : memref<32x64xf32, #tpu.memory_space<vmem>>, vector<32x64xf32>
    %c0_36 = arith.constant 0 : index
    %c0_37 = arith.constant 0 : index
    %145 = vector.load %arg7[%c0_36, %c0_37] : memref<6x32xf32, #tpu.memory_space<vmem>>, vector<6x32xf32>
    %cst_38 = arith.constant dense<0.000000e+00> : vector<8x64xf32>
    %146 = tpu.matmul %143, %144, %cst_38 {dimension_numbers = #tpu.dot_dimension_numbers<[1], [0], [0], [1], [0, 0, 1, 1], [], []>} : vector<8x32xf32>, vector<32x64xf32>, vector<8x64xf32> -> vector<8x64xf32>
    %147 = vector.extract_strided_slice %146 {offsets = [0, 0], sizes = [8, 32], strides = [1, 1]} : vector<8x64xf32> to vector<8x32xf32>
    %148 = vector.extract_strided_slice %146 {offsets = [0, 32], sizes = [8, 32], strides = [1, 1]} : vector<8x64xf32> to vector<8x32xf32>
    %149 = vector.extract_strided_slice %145 {offsets = [3, 0], sizes = [1, 32], strides = [1, 1]} : vector<6x32xf32> to vector<1x32xf32>
    %150 = vector.broadcast %149 : vector<1x32xf32> to vector<8x32xf32>
    %151 = arith.addf %148, %150 : vector<8x32xf32>
    %152 = vector.extract_strided_slice %145 {offsets = [4, 0], sizes = [1, 32], strides = [1, 1]} : vector<6x32xf32> to vector<1x32xf32>
    %153 = vector.extract_strided_slice %145 {offsets = [5, 0], sizes = [1, 32], strides = [1, 1]} : vector<6x32xf32> to vector<1x32xf32>
    %cst_39 = arith.constant 5.000000e-01 : f32
    %154 = vector.broadcast %cst_39 : f32 to vector<8x32xf32>
    %155 = arith.mulf %154, %151 : vector<8x32xf32>
    %cst_40 = arith.constant 4.471500e-02 : f32
    %156 = vector.broadcast %cst_40 : f32 to vector<8x32xf32>
    %157 = arith.mulf %156, %151 : vector<8x32xf32>
    %158 = arith.mulf %157, %151 : vector<8x32xf32>
    %159 = arith.mulf %158, %151 : vector<8x32xf32>
    %160 = arith.addf %151, %159 : vector<8x32xf32>
    %cst_41 = arith.constant 0.797884583 : f32
    %161 = vector.broadcast %cst_41 : f32 to vector<8x32xf32>
    %162 = arith.mulf %161, %160 : vector<8x32xf32>
    %163 = math.tanh %162 : vector<8x32xf32>
    %cst_42 = arith.constant 1.000000e+00 : f32
    %164 = vector.broadcast %cst_42 : f32 to vector<8x32xf32>
    %165 = arith.addf %164, %163 : vector<8x32xf32>
    %166 = arith.mulf %155, %165 : vector<8x32xf32>
    %cst_43 = arith.constant dense<0.000000e+00> : vector<8xf32>
    %167 = vector.multi_reduction <add>, %166, %cst_43 [1] : vector<8x32xf32> to vector<8xf32>
    %168 = vector.shape_cast %167 : vector<8xf32> to vector<8x1xf32>
    %cst_44 = arith.constant 3.200000e+01 : f32
    %169 = vector.broadcast %cst_44 : f32 to vector<8x1xf32>
    %170 = arith.divf %168, %169 : vector<8x1xf32>
    %171 = vector.broadcast %170 : vector<8x1xf32> to vector<8x32xf32>
    %172 = arith.subf %166, %171 : vector<8x32xf32>
    %173 = arith.mulf %172, %172 : vector<8x32xf32>
    %cst_45 = arith.constant dense<0.000000e+00> : vector<8xf32>
    %174 = vector.multi_reduction <add>, %173, %cst_45 [1] : vector<8x32xf32> to vector<8xf32>
    %175 = vector.shape_cast %174 : vector<8xf32> to vector<8x1xf32>
    %cst_46 = arith.constant 3.200000e+01 : f32
    %176 = vector.broadcast %cst_46 : f32 to vector<8x1xf32>
    %177 = arith.divf %175, %176 : vector<8x1xf32>
    %178 = vector.broadcast %170 : vector<8x1xf32> to vector<8x32xf32>
    %179 = arith.subf %166, %178 : vector<8x32xf32>
    %cst_47 = arith.constant 9.99999974E-6 : f32
    %180 = vector.broadcast %cst_47 : f32 to vector<8x1xf32>
    %181 = arith.addf %177, %180 : vector<8x1xf32>
    %182 = math.rsqrt %181 : vector<8x1xf32>
    %183 = vector.broadcast %182 : vector<8x1xf32> to vector<8x32xf32>
    %184 = arith.mulf %179, %183 : vector<8x32xf32>
    %185 = vector.broadcast %152 : vector<1x32xf32> to vector<8x32xf32>
    %186 = arith.mulf %184, %185 : vector<8x32xf32>
    %187 = vector.broadcast %153 : vector<1x32xf32> to vector<8x32xf32>
    %188 = arith.addf %186, %187 : vector<8x32xf32>
    %c0_48 = arith.constant 0 : index
    %c0_49 = arith.constant 0 : index
    %189 = vector.load %arg11[%c0_48, %c0_49] : memref<8x32xf32, #tpu.memory_space<vmem>>, vector<8x32xf32>
    %190 = arith.addf %189, %188 : vector<8x32xf32>
    %c0_50 = arith.constant 0 : index
    %c0_51 = arith.constant 0 : index
    %191 = vector.load %arg11[%c0_50, %c0_51] : memref<8x32xf32, #tpu.memory_space<vmem>>, vector<8x32xf32>
    tpu.vector_store %arg11[%c0_50, %c0_51], %190 {strides = array<i32>} : memref<8x32xf32, #tpu.memory_space<vmem>>, vector<8x32xf32>,
    %192 = vector.shape_cast %147 : vector<8x32xf32> to vector<1x8x32xf32>
    %193 = vector.extract_strided_slice %0 {offsets = [0, 0, 0], sizes = [1, 8, 1], strides = [1, 1, 1]} : vector<1x8x8xf32> to vector<1x8x1xf32>
    %194 = vector.extract_strided_slice %192 {offsets = [0, 0, 0], sizes = [1, 1, 32], strides = [1, 1, 1]} : vector<1x8x32xf32> to vector<1x1x32xf32>
    %195 = vector.broadcast %193 : vector<1x8x1xf32> to vector<1x8x32xf32>
    %196 = vector.broadcast %194 : vector<1x1x32xf32> to vector<1x8x32xf32>
    %197 = arith.mulf %195, %196 : vector<1x8x32xf32>
    %198 = vector.extract_strided_slice %0 {offsets = [0, 0, 1], sizes = [1, 8, 1], strides = [1, 1, 1]} : vector<1x8x8xf32> to vector<1x8x1xf32>
    %199 = vector.extract_strided_slice %192 {offsets = [0, 1, 0], sizes = [1, 1, 32], strides = [1, 1, 1]} : vector<1x8x32xf32> to vector<1x1x32xf32>
    %200 = vector.broadcast %198 : vector<1x8x1xf32> to vector<1x8x32xf32>
    %201 = vector.broadcast %199 : vector<1x1x32xf32> to vector<1x8x32xf32>
    %202 = arith.mulf %200, %201 : vector<1x8x32xf32>
    %203 = arith.addf %197, %202 : vector<1x8x32xf32>
    %204 = vector.extract_strided_slice %0 {offsets = [0, 0, 2], sizes = [1, 8, 1], strides = [1, 1, 1]} : vector<1x8x8xf32> to vector<1x8x1xf32>
    %205 = vector.extract_strided_slice %192 {offsets = [0, 2, 0], sizes = [1, 1, 32], strides = [1, 1, 1]} : vector<1x8x32xf32> to vector<1x1x32xf32>
    %206 = vector.broadcast %204 : vector<1x8x1xf32> to vector<1x8x32xf32>
    %207 = vector.broadcast %205 : vector<1x1x32xf32> to vector<1x8x32xf32>
    %208 = arith.mulf %206, %207 : vector<1x8x32xf32>
    %209 = arith.addf %203, %208 : vector<1x8x32xf32>
    %210 = vector.extract_strided_slice %0 {offsets = [0, 0, 3], sizes = [1, 8, 1], strides = [1, 1, 1]} : vector<1x8x8xf32> to vector<1x8x1xf32>
    %211 = vector.extract_strided_slice %192 {offsets = [0, 3, 0], sizes = [1, 1, 32], strides = [1, 1, 1]} : vector<1x8x32xf32> to vector<1x1x32xf32>
    %212 = vector.broadcast %210 : vector<1x8x1xf32> to vector<1x8x32xf32>
    %213 = vector.broadcast %211 : vector<1x1x32xf32> to vector<1x8x32xf32>
    %214 = arith.mulf %212, %213 : vector<1x8x32xf32>
    %215 = arith.addf %209, %214 : vector<1x8x32xf32>
    %216 = vector.extract_strided_slice %0 {offsets = [0, 0, 4], sizes = [1, 8, 1], strides = [1, 1, 1]} : vector<1x8x8xf32> to vector<1x8x1xf32>
    %217 = vector.extract_strided_slice %192 {offsets = [0, 4, 0], sizes = [1, 1, 32], strides = [1, 1, 1]} : vector<1x8x32xf32> to vector<1x1x32xf32>
    %218 = vector.broadcast %216 : vector<1x8x1xf32> to vector<1x8x32xf32>
    %219 = vector.broadcast %217 : vector<1x1x32xf32> to vector<1x8x32xf32>
    %220 = arith.mulf %218, %219 : vector<1x8x32xf32>
    %221 = arith.addf %215, %220 : vector<1x8x32xf32>
    %222 = vector.extract_strided_slice %0 {offsets = [0, 0, 5], sizes = [1, 8, 1], strides = [1, 1, 1]} : vector<1x8x8xf32> to vector<1x8x1xf32>
    %223 = vector.extract_strided_slice %192 {offsets = [0, 5, 0], sizes = [1, 1, 32], strides = [1, 1, 1]} : vector<1x8x32xf32> to vector<1x1x32xf32>
    %224 = vector.broadcast %222 : vector<1x8x1xf32> to vector<1x8x32xf32>
    %225 = vector.broadcast %223 : vector<1x1x32xf32> to vector<1x8x32xf32>
    %226 = arith.mulf %224, %225 : vector<1x8x32xf32>
    %227 = arith.addf %221, %226 : vector<1x8x32xf32>
    %228 = vector.extract_strided_slice %0 {offsets = [0, 0, 6], sizes = [1, 8, 1], strides = [1, 1, 1]} : vector<1x8x8xf32> to vector<1x8x1xf32>
    %229 = vector.extract_strided_slice %192 {offsets = [0, 6, 0], sizes = [1, 1, 32], strides = [1, 1, 1]} : vector<1x8x32xf32> to vector<1x1x32xf32>
    %230 = vector.broadcast %228 : vector<1x8x1xf32> to vector<1x8x32xf32>
    %231 = vector.broadcast %229 : vector<1x1x32xf32> to vector<1x8x32xf32>
    %232 = arith.mulf %230, %231 : vector<1x8x32xf32>
    %233 = arith.addf %227, %232 : vector<1x8x32xf32>
    %234 = vector.extract_strided_slice %0 {offsets = [0, 0, 7], sizes = [1, 8, 1], strides = [1, 1, 1]} : vector<1x8x8xf32> to vector<1x8x1xf32>
    %235 = vector.extract_strided_slice %192 {offsets = [0, 7, 0], sizes = [1, 1, 32], strides = [1, 1, 1]} : vector<1x8x32xf32> to vector<1x1x32xf32>
    %236 = vector.broadcast %234 : vector<1x8x1xf32> to vector<1x8x32xf32>
    %237 = vector.broadcast %235 : vector<1x1x32xf32> to vector<1x8x32xf32>
    %238 = arith.mulf %236, %237 : vector<1x8x32xf32>
    %239 = arith.addf %233, %238 : vector<1x8x32xf32>
    %240 = vector.shape_cast %239 : vector<1x8x32xf32> to vector<8x32xf32>
    %c1 = arith.constant 1 : index
    %241 = memref.load %arg3[%c1] : memref<2xf32, #tpu.memory_space<smem>>
    %cst_52 = arith.constant 1.000000e+00 : f32
    %242 = arith.addf %cst_52, %241 : f32
    %243 = vector.broadcast %242 : f32 to vector<8x32xf32>
    %244 = arith.mulf %243, %240 : vector<8x32xf32>
    %245 = arith.addf %147, %244 : vector<8x32xf32>
    %246 = vector.extract_strided_slice %145 {offsets = [0, 0], sizes = [1, 32], strides = [1, 1]} : vector<6x32xf32> to vector<1x32xf32>
    %247 = vector.broadcast %246 : vector<1x32xf32> to vector<8x32xf32>
    %248 = arith.addf %245, %247 : vector<8x32xf32>
    %249 = vector.extract_strided_slice %145 {offsets = [1, 0], sizes = [1, 32], strides = [1, 1]} : vector<6x32xf32> to vector<1x32xf32>
    %250 = vector.extract_strided_slice %145 {offsets = [2, 0], sizes = [1, 32], strides = [1, 1]} : vector<6x32xf32> to vector<1x32xf32>
    %cst_53 = arith.constant 5.000000e-01 : f32
    %251 = vector.broadcast %cst_53 : f32 to vector<8x32xf32>
    %252 = arith.mulf %251, %248 : vector<8x32xf32>
    %cst_54 = arith.constant 4.471500e-02 : f32
    %253 = vector.broadcast %cst_54 : f32 to vector<8x32xf32>
    %254 = arith.mulf %253, %248 : vector<8x32xf32>
    %255 = arith.mulf %254, %248 : vector<8x32xf32>
    %256 = arith.mulf %255, %248 : vector<8x32xf32>
    %257 = arith.addf %248, %256 : vector<8x32xf32>
    %cst_55 = arith.constant 0.797884583 : f32
    %258 = vector.broadcast %cst_55 : f32 to vector<8x32xf32>
    %259 = arith.mulf %258, %257 : vector<8x32xf32>
    %260 = math.tanh %259 : vector<8x32xf32>
    %cst_56 = arith.constant 1.000000e+00 : f32
    %261 = vector.broadcast %cst_56 : f32 to vector<8x32xf32>
    %262 = arith.addf %261, %260 : vector<8x32xf32>
    %263 = arith.mulf %252, %262 : vector<8x32xf32>
    %cst_57 = arith.constant dense<0.000000e+00> : vector<8xf32>
    %264 = vector.multi_reduction <add>, %263, %cst_57 [1] : vector<8x32xf32> to vector<8xf32>
    %265 = vector.shape_cast %264 : vector<8xf32> to vector<8x1xf32>
    %cst_58 = arith.constant 3.200000e+01 : f32
    %266 = vector.broadcast %cst_58 : f32 to vector<8x1xf32>
    %267 = arith.divf %265, %266 : vector<8x1xf32>
    %268 = vector.broadcast %267 : vector<8x1xf32> to vector<8x32xf32>
    %269 = arith.subf %263, %268 : vector<8x32xf32>
    %270 = arith.mulf %269, %269 : vector<8x32xf32>
    %cst_59 = arith.constant dense<0.000000e+00> : vector<8xf32>
    %271 = vector.multi_reduction <add>, %270, %cst_59 [1] : vector<8x32xf32> to vector<8xf32>
    %272 = vector.shape_cast %271 : vector<8xf32> to vector<8x1xf32>
    %cst_60 = arith.constant 3.200000e+01 : f32
    %273 = vector.broadcast %cst_60 : f32 to vector<8x1xf32>
    %274 = arith.divf %272, %273 : vector<8x1xf32>
    %275 = vector.broadcast %267 : vector<8x1xf32> to vector<8x32xf32>
    %276 = arith.subf %263, %275 : vector<8x32xf32>
    %cst_61 = arith.constant 9.99999974E-6 : f32
    %277 = vector.broadcast %cst_61 : f32 to vector<8x1xf32>
    %278 = arith.addf %274, %277 : vector<8x1xf32>
    %279 = math.rsqrt %278 : vector<8x1xf32>
    %280 = vector.broadcast %279 : vector<8x1xf32> to vector<8x32xf32>
    %281 = arith.mulf %276, %280 : vector<8x32xf32>
    %282 = vector.broadcast %249 : vector<1x32xf32> to vector<8x32xf32>
    %283 = arith.mulf %281, %282 : vector<8x32xf32>
    %284 = vector.broadcast %250 : vector<1x32xf32> to vector<8x32xf32>
    %285 = arith.addf %283, %284 : vector<8x32xf32>
    %c0_62 = arith.constant 0 : index
    %c0_63 = arith.constant 0 : index
    %286 = vector.load %arg12[%c0_62, %c0_63] : memref<8x32xf32, #tpu.memory_space<vmem>>, vector<8x32xf32>
    tpu.vector_store %arg12[%c0_62, %c0_63], %285 {strides = array<i32>} : memref<8x32xf32, #tpu.memory_space<vmem>>, vector<8x32xf32>,
    %c0_64 = arith.constant 0 : index
    %c0_65 = arith.constant 0 : index
    %287 = vector.load %arg8[%c0_64, %c0_65] : memref<32x32xf32, #tpu.memory_space<vmem>>, vector<32x32xf32>
    %c0_66 = arith.constant 0 : index
    %c0_67 = arith.constant 0 : index
    %288 = vector.load %arg9[%c0_66, %c0_67] : memref<3x32xf32, #tpu.memory_space<vmem>>, vector<3x32xf32>
    %c0_68 = arith.constant 0 : index
    %c0_69 = arith.constant 0 : index
    %289 = vector.load %arg12[%c0_68, %c0_69] : memref<8x32xf32, #tpu.memory_space<vmem>>, vector<8x32xf32>
    %cst_70 = arith.constant dense<0.000000e+00> : vector<8x32xf32>
    %290 = tpu.matmul %289, %287, %cst_70 {dimension_numbers = #tpu.dot_dimension_numbers<[1], [0], [0], [1], [0, 0, 1, 1], [], []>} : vector<8x32xf32>, vector<32x32xf32>, vector<8x32xf32> -> vector<8x32xf32>
    %c0_71 = arith.constant 0 : index
    %c0_72 = arith.constant 0 : index
    %291 = vector.load %arg11[%c0_71, %c0_72] : memref<8x32xf32, #tpu.memory_space<vmem>>, vector<8x32xf32>
    %292 = vector.extract_strided_slice %288 {offsets = [0, 0], sizes = [1, 32], strides = [1, 1]} : vector<3x32xf32> to vector<1x32xf32>
    %293 = vector.broadcast %292 : vector<1x32xf32> to vector<8x32xf32>
    %294 = arith.addf %290, %293 : vector<8x32xf32>
    %295 = vector.extract_strided_slice %288 {offsets = [1, 0], sizes = [1, 32], strides = [1, 1]} : vector<3x32xf32> to vector<1x32xf32>
    %296 = vector.extract_strided_slice %288 {offsets = [2, 0], sizes = [1, 32], strides = [1, 1]} : vector<3x32xf32> to vector<1x32xf32>
    %cst_73 = arith.constant 5.000000e-01 : f32
    %297 = vector.broadcast %cst_73 : f32 to vector<8x32xf32>
    %298 = arith.mulf %297, %294 : vector<8x32xf32>
    %cst_74 = arith.constant 4.471500e-02 : f32
    %299 = vector.broadcast %cst_74 : f32 to vector<8x32xf32>
    %300 = arith.mulf %299, %294 : vector<8x32xf32>
    %301 = arith.mulf %300, %294 : vector<8x32xf32>
    %302 = arith.mulf %301, %294 : vector<8x32xf32>
    %303 = arith.addf %294, %302 : vector<8x32xf32>
    %cst_75 = arith.constant 0.797884583 : f32
    %304 = vector.broadcast %cst_75 : f32 to vector<8x32xf32>
    %305 = arith.mulf %304, %303 : vector<8x32xf32>
    %306 = math.tanh %305 : vector<8x32xf32>
    %cst_76 = arith.constant 1.000000e+00 : f32
    %307 = vector.broadcast %cst_76 : f32 to vector<8x32xf32>
    %308 = arith.addf %307, %306 : vector<8x32xf32>
    %309 = arith.mulf %298, %308 : vector<8x32xf32>
    %cst_77 = arith.constant dense<0.000000e+00> : vector<8xf32>
    %310 = vector.multi_reduction <add>, %309, %cst_77 [1] : vector<8x32xf32> to vector<8xf32>
    %311 = vector.shape_cast %310 : vector<8xf32> to vector<8x1xf32>
    %cst_78 = arith.constant 3.200000e+01 : f32
    %312 = vector.broadcast %cst_78 : f32 to vector<8x1xf32>
    %313 = arith.divf %311, %312 : vector<8x1xf32>
    %314 = vector.broadcast %313 : vector<8x1xf32> to vector<8x32xf32>
    %315 = arith.subf %309, %314 : vector<8x32xf32>
    %316 = arith.mulf %315, %315 : vector<8x32xf32>
    %cst_79 = arith.constant dense<0.000000e+00> : vector<8xf32>
    %317 = vector.multi_reduction <add>, %316, %cst_79 [1] : vector<8x32xf32> to vector<8xf32>
    %318 = vector.shape_cast %317 : vector<8xf32> to vector<8x1xf32>
    %cst_80 = arith.constant 3.200000e+01 : f32
    %319 = vector.broadcast %cst_80 : f32 to vector<8x1xf32>
    %320 = arith.divf %318, %319 : vector<8x1xf32>
    %321 = vector.broadcast %313 : vector<8x1xf32> to vector<8x32xf32>
    %322 = arith.subf %309, %321 : vector<8x32xf32>
    %cst_81 = arith.constant 9.99999974E-6 : f32
    %323 = vector.broadcast %cst_81 : f32 to vector<8x1xf32>
    %324 = arith.addf %320, %323 : vector<8x1xf32>
    %325 = math.rsqrt %324 : vector<8x1xf32>
    %326 = vector.broadcast %325 : vector<8x1xf32> to vector<8x32xf32>
    %327 = arith.mulf %322, %326 : vector<8x32xf32>
    %328 = vector.broadcast %295 : vector<1x32xf32> to vector<8x32xf32>
    %329 = arith.mulf %327, %328 : vector<8x32xf32>
    %330 = vector.broadcast %296 : vector<1x32xf32> to vector<8x32xf32>
    %331 = arith.addf %329, %330 : vector<8x32xf32>
    %332 = arith.addf %291, %331 : vector<8x32xf32>
    %c0_82 = arith.constant 0 : index
    %c0_83 = arith.constant 0 : index
    %333 = vector.load %arg11[%c0_82, %c0_83] : memref<8x32xf32, #tpu.memory_space<vmem>>, vector<8x32xf32>
    tpu.vector_store %arg11[%c0_82, %c0_83], %332 {strides = array<i32>} : memref<8x32xf32, #tpu.memory_space<vmem>>, vector<8x32xf32>,
    %c0_84 = arith.constant 0 : index
    %c0_85 = arith.constant 0 : index
    %334 = vector.load %arg11[%c0_84, %c0_85] : memref<8x32xf32, #tpu.memory_space<vmem>>, vector<8x32xf32>
    %c0_86 = arith.constant 0 : index
    %c0_87 = arith.constant 0 : index
    %335 = vector.load %arg10[%c0_86, %c0_87] : memref<8x32xf32, #tpu.memory_space<vmem>>, vector<8x32xf32>
    tpu.vector_store %arg10[%c0_86, %c0_87], %334 {strides = array<i32>} : memref<8x32xf32, #tpu.memory_space<vmem>>, vector<8x32xf32>,
    return
  }
  func.func @transform_0(%arg0: i32) -> (i32, i32) {
    %c0_i32 = arith.constant 0 : i32
    %c0_i32_0 = arith.constant 0 : i32
    return %arg0, %c0_i32 : i32, i32
  }
  func.func @transform_1(%arg0: i32) -> (i32, i32, i32) {
    %c0_i32 = arith.constant 0 : i32
    %c0_i32_0 = arith.constant 0 : i32
    %c0_i32_1 = arith.constant 0 : i32
    return %arg0, %c0_i32, %c0_i32_0 : i32, i32, i32
  }
  func.func @transform_2(%arg0: i32) -> i32 {
    %c0_i32 = arith.constant 0 : i32
    %c0_i32_0 = arith.constant 0 : i32
    return %c0_i32 : i32
  }
  func.func @transform_3(%arg0: i32) -> (i32, i32) {
    %c0_i32 = arith.constant 0 : i32
    %c0_i32_0 = arith.constant 0 : i32
    %c0_i32_1 = arith.constant 0 : i32
    return %c0_i32, %c0_i32_0 : i32, i32
  }
  func.func @transform_4(%arg0: i32) -> (i32, i32) {
    %c0_i32 = arith.constant 0 : i32
    %c0_i32_0 = arith.constant 0 : i32
    %c0_i32_1 = arith.constant 0 : i32
    return %c0_i32, %c0_i32_0 : i32, i32
  }
  func.func @transform_5(%arg0: i32) -> (i32, i32) {
    %c0_i32 = arith.constant 0 : i32
    %c0_i32_0 = arith.constant 0 : i32
    %c0_i32_1 = arith.constant 0 : i32
    return %c0_i32, %c0_i32_0 : i32, i32
  }
  func.func @transform_6(%arg0: i32) -> (i32, i32) {
    %c0_i32 = arith.constant 0 : i32
    %c0_i32_0 = arith.constant 0 : i32
    %c0_i32_1 = arith.constant 0 : i32
    return %c0_i32, %c0_i32_0 : i32, i32
  }
  func.func @transform_7(%arg0: i32) -> (i32, i32) {
    %c0_i32 = arith.constant 0 : i32
    %c0_i32_0 = arith.constant 0 : i32
    %c0_i32_1 = arith.constant 0 : i32
    return %c0_i32, %c0_i32_0 : i32, i32
  }
  func.func @transform_8(%arg0: i32) -> (i32, i32) {
    %c0_i32 = arith.constant 0 : i32
    %c0_i32_0 = arith.constant 0 : i32
    %c0_i32_1 = arith.constant 0 : i32
    return %c0_i32, %c0_i32_0 : i32, i32
  }
  func.func @transform_9(%arg0: i32) -> (i32, i32) {
    %c0_i32 = arith.constant 0 : i32
    %c0_i32_0 = arith.constant 0 : i32
    return %arg0, %c0_i32 : i32, i32
  }
}

</mosaic_0001>

<llo_original>
// kernel: tpu_custom_call.1
$region0: #{tpu_custom_call.1}
  #allocation0 [shape = 'u32[]', space=smem, size = 0x4, offset = 0x4, fixed_abs, tag = 'smem constant byte address 0x4 - core index']
  #allocation1 [shape = 'u32[72,128]{1,0:T(1,128)}', space=vmem, size = 0x9000, scoped, tag = 'internal scratch']
  #allocation2 [shape = 'f32[8,32]{1,0:T(8,128)}', space=vmem, size = 0x1000, scoped, tag = 'scratch operand']
  #allocation3 [shape = 'f32[8,32]{1,0:T(8,128)}', space=vmem, size = 0x1000, scoped, tag = 'scratch operand']
  %s0 = inlined_call_operand.hbm [shape: f32[16,16], index: 0, kind: input, shape index: {}]
  %s1 = inlined_call_operand.hbm [shape: f32[2,8,8], index: 1, kind: input, shape index: {}]
  %s2 = inlined_call_operand.vmem [shape: f32[2], index: 2, kind: input, shape index: {}]
  %s3 = inlined_call_operand.hbm [shape: f32[16,64], index: 3, kind: input, shape index: {}]
  %s4 = inlined_call_operand.hbm [shape: f32[6,32], index: 4, kind: input, shape index: {}]
  %s5 = inlined_call_operand.hbm [shape: f32[32,64], index: 5, kind: input, shape index: {}]
  %s6 = inlined_call_operand.hbm [shape: f32[6,32], index: 6, kind: input, shape index: {}]
  %s7 = inlined_call_operand.hbm [shape: f32[32,32], index: 7, kind: input, shape index: {}]
  %s8 = inlined_call_operand.vmem [shape: f32[3,32], index: 8, kind: input, shape index: {}]
  %s9 = inlined_call_operand.hbm [shape: f32[16,32], index: 9, kind: output, shape index: {}]
  %s10 = sld [smem:[#allocation0]]
  $region101: #{tpu_custom_call.1} parent=0
    _
  %s12 = ssub.s32 1, %s10
  %s13 = scalar_select 0, %s12, %s10
  $region1: #{tpu_custom_call.1} parent=0
    #allocation4 [shape = 'u8[8192]{0}', space=vmem, size = 0x2000, scoped, tag = 'input window, operand 0']
    #allocation5 [shape = 's32[2]{0}', space=sflag, size = 0x8, scoped, tag = 'scoped memory for tpu_custom_call.1']
    #allocation6 [shape = 's32[2]{0}', space=sflag, size = 0x8, scoped, tag = 'scoped memory for tpu_custom_call.1']
    #allocation7 [shape = 's32[2]{0}', space=sflag, size = 0x8, scoped, tag = 'scoped memory for tpu_custom_call.1']
    #allocation8 [shape = 'u8[8192]{0}', space=vmem, size = 0x2000, scoped, tag = 'input window, operand 1']
    #allocation9 [shape = 's32[2]{0}', space=sflag, size = 0x8, scoped, tag = 'scoped memory for tpu_custom_call.1']
    #allocation10 [shape = 'u8[512]{0}', space=smem, size = 0x200, scoped, tag = 'input window, operand 2, single buffered']
    #allocation11 [shape = 'u8[8192]{0}', space=vmem, size = 0x2000, scoped, tag = 'input window, operand 3, single buffered']
    #allocation12 [shape = 'u8[4096]{0}', space=vmem, size = 0x1000, scoped, tag = 'input window, operand 4, single buffered']
    #allocation13 [shape = 's32[1]{0}', space=sflag, size = 0x4, scoped, tag = 'scoped memory for tpu_custom_call.1']
    #allocation14 [shape = 'u8[16384]{0}', space=vmem, size = 0x4000, scoped, tag = 'input window, operand 5, single buffered']
    #allocation15 [shape = 'u8[4096]{0}', space=vmem, size = 0x1000, scoped, tag = 'input window, operand 6, single buffered']
    #allocation16 [shape = 's32[1]{0}', space=sflag, size = 0x4, scoped, tag = 'scoped memory for tpu_custom_call.1']
    #allocation17 [shape = 'u8[16384]{0}', space=vmem, size = 0x4000, scoped, tag = 'input window, operand 7, single buffered']
    #allocation18 [shape = 'u8[8192]{0}', space=vmem, size = 0x2000, scoped, tag = 'output window, operand 0']
    %14 = vsyncpa [#allocation5], 0
    %s15 = scalar_lea.sflag [#allocation5], 1
    %16 = vsyncpa %s15, 0
    %17 = vsyncpa [#allocation9], 0
    %s18 = scalar_lea.sflag [#allocation9], 1
    %19 = vsyncpa %s18, 0
    %20 = vsyncpa [#allocation7], 0
    %21 = vsyncpa [#allocation13], 0
    %22 = vsyncpa [#allocation16], 0
    %23 = vsyncpa [#allocation6], 0
    %s24 = scalar_lea.sflag [#allocation6], 1
    %25 = vsyncpa %s24, 0
    loop: start=0, step=1, limit=4
    $region2: #{tpu_custom_call.1} parent=1 // loop_pre_header
      _
    $region3: #{tpu_custom_call.1} parent=1 // loop_header
      %s27 = sphi 0, %s31
      %p28 = scmp.ge.s32.totalorder %s27, 4
      %s37 = sphi 0, %s39
      %s40 = sphi 0, %s37
      %s41 = sphi 0, %s40
      %s57 = sphi 0, %s41
      %s63 = sphi 0, %s65
      %s66 = sphi 0, %s63
      %s67 = sphi 0, %s66
      %s83 = sphi 0, %s67
      %s87 = sphi 0, %s87
      %s89 = sphi 0, %s87
      %s90 = sphi 0, %s89
      %s104 = sphi 0, %s90
      %s108 = sphi 0, %s108
      %s110 = sphi 0, %s108
      %s111 = sphi 0, %s110
      %s125 = sphi 0, %s111
      %s129 = sphi 0, %s129
      %s131 = sphi 0, %s129
      %s132 = sphi 0, %s131
      %s146 = sphi 0, %s132
      %s150 = sphi 0, %s150
      %s152 = sphi 0, %s150
      %s153 = sphi 0, %s152
      %s167 = sphi 0, %s153
      %s171 = sphi 0, %s171
      %s173 = sphi 0, %s171
      %s174 = sphi 0, %s173
      %s188 = sphi 0, %s174
      %s192 = sphi 0, %s192
      %s194 = sphi 0, %s192
      %s195 = sphi 0, %s194
      %s209 = sphi 0, %s195
      %s213 = sphi 0, %s213
      %s215 = sphi 0, %s213
      %s216 = sphi 0, %s215
      %s230 = sphi 0, %s216
      %s236 = sphi 0, %s238
      %s239 = sphi 0, %s236
      %s240 = sphi 0, %s239
      %s256 = sphi 0, %s240
    $region4: #{tpu_custom_call.1} parent=1 // loop_header_branch
      %30 = sbr.rel (%p28) target = $region8
    $region5: #{tpu_custom_call.1} parent=1 // loop_body
      %s32 = ssub.s32 %s27, 1
      %s33 = ssub.s32 %s27, 2
      %s34 = sadd.s32 %s27, 1
      %s35 = ssub.s32 %s27, %s34
      %p36 = scmp.eq.s32.totalorder %s35, 0
      %s38 = sadd.s32 %s37, 1
      %s39 = scalar_select %p36, %s37, %s38
      %p42 = pneg %p36
      %p43 = scmp.eq.s32.totalorder %s27, 1
      %p44 = por %p42, %p43
      %p45 = scmp.ne.s32.totalorder %s37, %s40
      %p46 = scmp.eq.s32.totalorder %s27, 0
      %p47 = por %p45, %p46
      %p48 = scmp.ne.s32.totalorder %s37, %s40
      %p49 = scmp.eq.s32.totalorder %s32, 1
      %p50 = por %p48, %p49
      %p51 = scmp.ne.s32.totalorder %s40, %s41
      %p52 = scmp.eq.s32.totalorder %s32, 0
      %p53 = por %p51, %p52
      %p54 = scmp.ne.s32.totalorder %s40, %s41
      %p55 = scmp.eq.s32.totalorder %s33, 1
      %p56 = por %p54, %p55
      %p58 = scmp.ne.s32.totalorder %s41, %s57
      %p59 = scmp.eq.s32.totalorder %s33, 0
      %p60 = por %p58, %p59
      %s61 = ssub.s32 %s27, %s34
      %p62 = scmp.eq.s32.totalorder %s61, 0
      %s64 = sadd.s32 %s63, 1
      %s65 = scalar_select %p62, %s63, %s64
      %p68 = pneg %p62
      %p69 = scmp.eq.s32.totalorder %s27, 1
      %p70 = por %p68, %p69
      %p71 = scmp.ne.s32.totalorder %s63, %s66
      %p72 = scmp.eq.s32.totalorder %s27, 0
      %p73 = por %p71, %p72
      %p74 = scmp.ne.s32.totalorder %s63, %s66
      %p75 = scmp.eq.s32.totalorder %s32, 1
      %p76 = por %p74, %p75
      %p77 = scmp.ne.s32.totalorder %s66, %s67
      %p78 = scmp.eq.s32.totalorder %s32, 0
      %p79 = por %p77, %p78
      %p80 = scmp.ne.s32.totalorder %s66, %s67
      %p81 = scmp.eq.s32.totalorder %s33, 1
      %p82 = por %p80, %p81
      %p84 = scmp.ne.s32.totalorder %s67, %s83
      %p85 = scmp.eq.s32.totalorder %s33, 0
      %p86 = por %p84, %p85
      %s88 = sadd.s32 %s87, 1
      %p91 = scmp.eq.s32.totalorder %s27, 1
      %p92 = scmp.ne.s32.totalorder %s87, %s89
      %p93 = scmp.eq.s32.totalorder %s27, 0
      %p94 = por %p92, %p93
      %p95 = scmp.ne.s32.totalorder %s87, %s89
      %p96 = scmp.eq.s32.totalorder %s32, 1
      %p97 = por %p95, %p96
      %p98 = scmp.ne.s32.totalorder %s89, %s90
      %p99 = scmp.eq.s32.totalorder %s32, 0
      %p100 = por %p98, %p99
      %p101 = scmp.ne.s32.totalorder %s89, %s90
      %p102 = scmp.eq.s32.totalorder %s33, 1
      %p103 = por %p101, %p102
      %p105 = scmp.ne.s32.totalorder %s90, %s104
      %p106 = scmp.eq.s32.totalorder %s33, 0
      %p107 = por %p105, %p106
      %s109 = sadd.s32 %s108, 1
      %p112 = scmp.eq.s32.totalorder %s27, 1
      %p113 = scmp.ne.s32.totalorder %s108, %s110
      %p114 = scmp.eq.s32.totalorder %s27, 0
      %p115 = por %p113, %p114
      %p116 = scmp.ne.s32.totalorder %s108, %s110
      %p117 = scmp.eq.s32.totalorder %s32, 1
      %p118 = por %p116, %p117
      %p119 = scmp.ne.s32.totalorder %s110, %s111
      %p120 = scmp.eq.s32.totalorder %s32, 0
      %p121 = por %p119, %p120
      %p122 = scmp.ne.s32.totalorder %s110, %s111
      %p123 = scmp.eq.s32.totalorder %s33, 1
      %p124 = por %p122, %p123
      %p126 = scmp.ne.s32.totalorder %s111, %s125
      %p127 = scmp.eq.s32.totalorder %s33, 0
      %p128 = por %p126, %p127
      %s130 = sadd.s32 %s129, 1
      %p133 = scmp.eq.s32.totalorder %s27, 1
      %p134 = scmp.ne.s32.totalorder %s129, %s131
      %p135 = scmp.eq.s32.totalorder %s27, 0
      %p136 = por %p134, %p135
      %p137 = scmp.ne.s32.totalorder %s129, %s131
      %p138 = scmp.eq.s32.totalorder %s32, 1
      %p139 = por %p137, %p138
      %p140 = scmp.ne.s32.totalorder %s131, %s132
      %p141 = scmp.eq.s32.totalorder %s32, 0
      %p142 = por %p140, %p141
      %p143 = scmp.ne.s32.totalorder %s131, %s132
      %p144 = scmp.eq.s32.totalorder %s33, 1
      %p145 = por %p143, %p144
      %p147 = scmp.ne.s32.totalorder %s132, %s146
      %p148 = scmp.eq.s32.totalorder %s33, 0
      %p149 = por %p147, %p148
      %s151 = sadd.s32 %s150, 1
      %p154 = scmp.eq.s32.totalorder %s27, 1
      %p155 = scmp.ne.s32.totalorder %s150, %s152
      %p156 = scmp.eq.s32.totalorder %s27, 0
      %p157 = por %p155, %p156
      %p158 = scmp.ne.s32.totalorder %s150, %s152
      %p159 = scmp.eq.s32.totalorder %s32, 1
      %p160 = por %p158, %p159
      %p161 = scmp.ne.s32.totalorder %s152, %s153
      %p162 = scmp.eq.s32.totalorder %s32, 0
      %p163 = por %p161, %p162
      %p164 = scmp.ne.s32.totalorder %s152, %s153
      %p165 = scmp.eq.s32.totalorder %s33, 1
      %p166 = por %p164, %p165
      %p168 = scmp.ne.s32.totalorder %s153, %s167
      %p169 = scmp.eq.s32.totalorder %s33, 0
      %p170 = por %p168, %p169
      %s172 = sadd.s32 %s171, 1
      %p175 = scmp.eq.s32.totalorder %s27, 1
      %p176 = scmp.ne.s32.totalorder %s171, %s173
      %p177 = scmp.eq.s32.totalorder %s27, 0
      %p178 = por %p176, %p177
      %p179 = scmp.ne.s32.totalorder %s171, %s173
      %p180 = scmp.eq.s32.totalorder %s32, 1
      %p181 = por %p179, %p180
      %p182 = scmp.ne.s32.totalorder %s173, %s174
      %p183 = scmp.eq.s32.totalorder %s32, 0
      %p184 = por %p182, %p183
      %p185 = scmp.ne.s32.totalorder %s173, %s174
      %p186 = scmp.eq.s32.totalorder %s33, 1
      %p187 = por %p185, %p186
      %p189 = scmp.ne.s32.totalorder %s174, %s188
      %p190 = scmp.eq.s32.totalorder %s33, 0
      %p191 = por %p189, %p190
      %s193 = sadd.s32 %s192, 1
      %p196 = scmp.eq.s32.totalorder %s27, 1
      %p197 = scmp.ne.s32.totalorder %s192, %s194
      %p198 = scmp.eq.s32.totalorder %s27, 0
      %p199 = por %p197, %p198
      %p200 = scmp.ne.s32.totalorder %s192, %s194
      %p201 = scmp.eq.s32.totalorder %s32, 1
      %p202 = por %p200, %p201
      %p203 = scmp.ne.s32.totalorder %s194, %s195
      %p204 = scmp.eq.s32.totalorder %s32, 0
      %p205 = por %p203, %p204
      %p206 = scmp.ne.s32.totalorder %s194, %s195
      %p207 = scmp.eq.s32.totalorder %s33, 1
      %p208 = por %p206, %p207
      %p210 = scmp.ne.s32.totalorder %s195, %s209
      %p211 = scmp.eq.s32.totalorder %s33, 0
      %p212 = por %p210, %p211
      %s214 = sadd.s32 %s213, 1
      %p217 = scmp.eq.s32.totalorder %s27, 1
      %p218 = scmp.ne.s32.totalorder %s213, %s215
      %p219 = scmp.eq.s32.totalorder %s27, 0
      %p220 = por %p218, %p219
      %p221 = scmp.ne.s32.totalorder %s213, %s215
      %p222 = scmp.eq.s32.totalorder %s32, 1
      %p223 = por %p221, %p222
      %p224 = scmp.ne.s32.totalorder %s215, %s216
      %p225 = scmp.eq.s32.totalorder %s32, 0
      %p226 = por %p224, %p225
      %p227 = scmp.ne.s32.totalorder %s215, %s216
      %p228 = scmp.eq.s32.totalorder %s33, 1
      %p229 = por %p227, %p228
      %p231 = scmp.ne.s32.totalorder %s216, %s230
      %p232 = scmp.eq.s32.totalorder %s33, 0
      %p233 = por %p231, %p232
      %s234 = ssub.s32 %s27, %s34
      %p235 = scmp.eq.s32.totalorder %s234, 0
      %s237 = sadd.s32 %s236, 1
      %s238 = scalar_select %p235, %s236, %s237
      %p241 = pneg %p235
      %p242 = scmp.eq.s32.totalorder %s27, 1
      %p243 = por %p241, %p242
      %p244 = scmp.ne.s32.totalorder %s236, %s239
      %p245 = scmp.eq.s32.totalorder %s27, 0
      %p246 = por %p244, %p245
      %p247 = scmp.ne.s32.totalorder %s236, %s239
      %p248 = scmp.eq.s32.totalorder %s32, 1
      %p249 = por %p247, %p248
      %p250 = scmp.ne.s32.totalorder %s239, %s240
      %p251 = scmp.eq.s32.totalorder %s32, 0
      %p252 = por %p250, %p251
      %p253 = scmp.ne.s32.totalorder %s239, %s240
      %p254 = scmp.eq.s32.totalorder %s33, 1
      %p255 = por %p253, %p254
      %p257 = scmp.ne.s32.totalorder %s240, %s256
      %p258 = scmp.eq.s32.totalorder %s33, 0
      %p259 = por %p257, %p258
      %p260 = scmp.le.s32.totalorder 1, %s27
      %p261 = scmp.lt.s32.totalorder %s27, 3
      %p262 = pnand %p260, %p261
      %p263 = pneg %p262
      // Predicated region
      $region9: #{tpu_custom_call.1} parent=5 // pred_check
        _
      $region10: #{tpu_custom_call.1} parent=5 // pred_check_branch
        %265 = sbr.rel (%p262) target = $region12
      $region11: #{tpu_custom_call.1} parent=5 // pred_region
        %s266 = ssub.s32 %s27, 1
        // Predicated region
        $region13: #{tpu_custom_call.1} parent=11 // pred_check
          %p267 = pneg %p100
        $region14: #{tpu_custom_call.1} parent=11 // pred_check_branch
          %269 = sbr.rel (%p267) target = $region16
        $region15: #{tpu_custom_call.1} parent=11 // pred_region
          %271 = vsyncadd [#allocation7], 0
          %s273 = sshll.u32 %s2, 4
          %s274 = int_to_ptr.vmem [resolvable:$true] %s273
          %276 = dma.vmem_to_smem %s274, 16, [#allocation10], [#allocation7]
        $region16: #{tpu_custom_call.1} parent=11 // pred_fallthru
          _
        // Predicated region
        $region17: #{tpu_custom_call.1} parent=11 // pred_check
          %p277 = pneg %p121
        $region18: #{tpu_custom_call.1} parent=11 // pred_check_branch
          %279 = sbr.rel (%p277) target = $region20
        $region19: #{tpu_custom_call.1} parent=11 // pred_region
          %281 = vsyncadd [#allocation9], 0
          %s282 = sshll.u32 %s3, 4
          %s283 = int_to_ptr.hbm [resolvable:$true] %s282
          %s284 = sshll.u32 [#allocation11], 4
          %s285 = int_to_ptr.vmem [resolvable:$true] %s284
          %290 = dma.hbm_to_vmem [thread:$0]  %s283, 256, %s285, [#allocation9], 128, 128, 8
        $region20: #{tpu_custom_call.1} parent=11 // pred_fallthru
          _
        // Predicated region
        $region21: #{tpu_custom_call.1} parent=11 // pred_check
          %p291 = pneg %p142
        $region22: #{tpu_custom_call.1} parent=11 // pred_check_branch
          %293 = sbr.rel (%p291) target = $region24
        $region23: #{tpu_custom_call.1} parent=11 // pred_region
          %295 = vsyncadd [#allocation13], 0
          %s297 = sshll.u32 %s4, 4
          %s298 = int_to_ptr.hbm [resolvable:$true] %s297
          %s299 = sshll.u32 [#allocation12], 4
          %s300 = int_to_ptr.vmem [resolvable:$true] %s299
          %302 = dma.hbm_to_vmem [thread:$0]  %s298, 128, %s300, [#allocation13]
        $region24: #{tpu_custom_call.1} parent=11 // pred_fallthru
          _
        // Predicated region
        $region25: #{tpu_custom_call.1} parent=11 // pred_check
          %p303 = pneg %p163
        $region26: #{tpu_custom_call.1} parent=11 // pred_check_branch
          %305 = sbr.rel (%p303) target = $region28
        $region27: #{tpu_custom_call.1} parent=11 // pred_region
          %307 = vsyncadd [#allocation13], 0
          %s308 = sshll.u32 %s5, 4
          %s309 = int_to_ptr.hbm [resolvable:$true] %s308
          %s310 = sshll.u32 [#allocation14], 4
          %s311 = int_to_ptr.vmem [resolvable:$true] %s310
          %316 = dma.hbm_to_vmem [thread:$0]  %s309, 512, %s311, [#allocation13], 128, 128, 8
        $region28: #{tpu_custom_call.1} parent=11 // pred_fallthru
          _
        // Predicated region
        $region29: #{tpu_custom_call.1} parent=11 // pred_check
          %p317 = pneg %p184
        $region30: #{tpu_custom_call.1} parent=11 // pred_check_branch
          %319 = sbr.rel (%p317) target = $region32
        $region31: #{tpu_custom_call.1} parent=11 // pred_region
          %321 = vsyncadd [#allocation16], 0
          %s323 = sshll.u32 %s6, 4
          %s324 = int_to_ptr.hbm [resolvable:$true] %s323
          %s325 = sshll.u32 [#allocation15], 4
          %s326 = int_to_ptr.vmem [resolvable:$true] %s325
          %328 = dma.hbm_to_vmem [thread:$0]  %s324, 128, %s326, [#allocation16]
        $region32: #{tpu_custom_call.1} parent=11 // pred_fallthru
          _
        // Predicated region
        $region33: #{tpu_custom_call.1} parent=11 // pred_check
          %p329 = pneg %p205
        $region34: #{tpu_custom_call.1} parent=11 // pred_check_branch
          %331 = sbr.rel (%p329) target = $region36
        $region35: #{tpu_custom_call.1} parent=11 // pred_region
          %333 = vsyncadd [#allocation16], 0
          %s334 = sshll.u32 %s7, 4
          %s335 = int_to_ptr.hbm [resolvable:$true] %s334
          %s336 = sshll.u32 [#allocation17], 4
          %s337 = int_to_ptr.vmem [resolvable:$true] %s336
          %342 = dma.hbm_to_vmem [thread:$0]  %s335, 512, %s337, [#allocation16], 128, 128, 8
        $region36: #{tpu_custom_call.1} parent=11 // pred_fallthru
          _
        // Predicated region
        $region37: #{tpu_custom_call.1} parent=11 // pred_check
          %p343 = pneg %p226
        $region38: #{tpu_custom_call.1} parent=11 // pred_check_branch
          %345 = sbr.rel (%p343) target = $region40
        $region39: #{tpu_custom_call.1} parent=11 // pred_region
          _
        $region40: #{tpu_custom_call.1} parent=11 // pred_fallthru
          _
      $region12: #{tpu_custom_call.1} parent=5 // pred_fallthru
        _
      %p346 = scmp.lt.s32.totalorder %s27, 2
      // Predicated region
      $region41: #{tpu_custom_call.1} parent=5 // pred_check
        %p347 = pneg %p346
      $region42: #{tpu_custom_call.1} parent=5 // pred_check_branch
        %349 = sbr.rel (%p347) target = $region44
      $region43: #{tpu_custom_call.1} parent=5 // pred_region
        // Predicated region
        $region45: #{tpu_custom_call.1} parent=43 // pred_check
          %p350 = pneg %p47
        $region46: #{tpu_custom_call.1} parent=43 // pred_check_branch
          %352 = sbr.rel (%p350) target = $region48
        $region47: #{tpu_custom_call.1} parent=43 // pred_region
          %s353 = sand.u32 %s37, 1
          %s354 = scalar_lea.sflag [#allocation5], %s353
          %s355 = sand.u32 %s37, 1
          %s356 = smul.addr %s355, 8
          %s357 = scalar_lea.vmem [#allocation4], %s356
          %359 = vsyncadd %s354, 0
          %s360 = smul.addr %s27, 8
          %s361 = scalar_lea.hbm %s0, %s360
          %s363 = sshll.u32 %s361, 4
          %s364 = int_to_ptr.hbm [resolvable:$true] %s363
          %s365 = sshll.u32 %s357, 4
          %s366 = int_to_ptr.vmem [resolvable:$true] %s365
          %368 = dma.hbm_to_vmem [thread:$0]  %s364, 128, %s366, %s354
        $region48: #{tpu_custom_call.1} parent=43 // pred_fallthru
          _
        // Predicated region
        $region49: #{tpu_custom_call.1} parent=43 // pred_check
          %p369 = pneg %p73
        $region50: #{tpu_custom_call.1} parent=43 // pred_check_branch
          %371 = sbr.rel (%p369) target = $region52
        $region51: #{tpu_custom_call.1} parent=43 // pred_region
          %s372 = sand.u32 %s27, 1
          %s373 = scalar_lea.sflag [#allocation9], %s372
          %s374 = sand.u32 %s63, 1
          %s375 = smul.addr %s374, 8
          %s376 = scalar_lea.vmem [#allocation8], %s375
          %378 = vsyncadd %s373, 0
          %s379 = smul.addr %s27, 8
          %s380 = scalar_lea.hbm %s1, %s379
          %s382 = sshll.u32 %s380, 4
          %s383 = int_to_ptr.hbm [resolvable:$true] %s382
          %s384 = sshll.u32 %s376, 4
          %s385 = int_to_ptr.vmem [resolvable:$true] %s384
          %387 = dma.hbm_to_vmem [thread:$0]  %s383, 128, %s385, %s373
        $region52: #{tpu_custom_call.1} parent=43 // pred_fallthru
          _
      $region44: #{tpu_custom_call.1} parent=5 // pred_fallthru
        _
      %p388 = scmp.le.s32.totalorder 1, %s27
      %p389 = scmp.lt.s32.totalorder %s27, 3
      %p390 = pnand %p388, %p389
      %p391 = pneg %p390
      // Predicated region
      $region53: #{tpu_custom_call.1} parent=5 // pred_check
        _
      $region54: #{tpu_custom_call.1} parent=5 // pred_check_branch
        %393 = sbr.rel (%p390) target = $region56
      $region55: #{tpu_custom_call.1} parent=5 // pred_region
        %s394 = ssub.s32 %s27, 1
        %s395 = sand.u32 %s40, 1
        %s396 = scalar_lea.sflag [#allocation5], %s395
        %s397 = sand.u32 %s40, 1
        %s398 = smul.addr %s397, 8
        %s399 = scalar_lea.vmem [#allocation4], %s398
        // Predicated region
        $region57: #{tpu_custom_call.1} parent=55 // pred_check
          %p400 = pneg %p53
        $region58: #{tpu_custom_call.1} parent=55 // pred_check_branch
          %402 = sbr.rel (%p400) target = $region60
        $region59: #{tpu_custom_call.1} parent=55 // pred_region
          %404 = dma.done %s396, 128
        $region60: #{tpu_custom_call.1} parent=55 // pred_fallthru
          _
        %s405 = sand.u32 %s32, 1
        %s406 = scalar_lea.sflag [#allocation9], %s405
        %s407 = sand.u32 %s66, 1
        %s408 = smul.addr %s407, 8
        %s409 = scalar_lea.vmem [#allocation8], %s408
        // Predicated region
        $region61: #{tpu_custom_call.1} parent=55 // pred_check
          %p410 = pneg %p79
        $region62: #{tpu_custom_call.1} parent=55 // pred_check_branch
          %412 = sbr.rel (%p410) target = $region64
        $region63: #{tpu_custom_call.1} parent=55 // pred_region
          %414 = dma.done %s406, 128
        $region64: #{tpu_custom_call.1} parent=55 // pred_fallthru
          _
        // Predicated region
        $region65: #{tpu_custom_call.1} parent=55 // pred_check
          %p415 = pneg %p100
        $region66: #{tpu_custom_call.1} parent=55 // pred_check_branch
          %417 = sbr.rel (%p415) target = $region68
        $region67: #{tpu_custom_call.1} parent=55 // pred_region
          %419 = dma.done [#allocation7], 16
        $region68: #{tpu_custom_call.1} parent=55 // pred_fallthru
          _
        // Predicated region
        $region69: #{tpu_custom_call.1} parent=55 // pred_check
          %p420 = pneg %p121
        $region70: #{tpu_custom_call.1} parent=55 // pred_check_branch
          %422 = sbr.rel (%p420) target = $region72
        $region71: #{tpu_custom_call.1} parent=55 // pred_region
          %424 = dma.done [#allocation9], 256
        $region72: #{tpu_custom_call.1} parent=55 // pred_fallthru
          _
        // Predicated region
        $region73: #{tpu_custom_call.1} parent=55 // pred_check
          %p425 = pneg %p142
        $region74: #{tpu_custom_call.1} parent=55 // pred_check_branch
          %427 = sbr.rel (%p425) target = $region76
        $region75: #{tpu_custom_call.1} parent=55 // pred_region
          %429 = dma.done [#allocation13], 128
        $region76: #{tpu_custom_call.1} parent=55 // pred_fallthru
          _
        // Predicated region
        $region77: #{tpu_custom_call.1} parent=55 // pred_check
          %p430 = pneg %p163
        $region78: #{tpu_custom_call.1} parent=55 // pred_check_branch
          %432 = sbr.rel (%p430) target = $region80
        $region79: #{tpu_custom_call.1} parent=55 // pred_region
          %434 = dma.done [#allocation13], 512
        $region80: #{tpu_custom_call.1} parent=55 // pred_fallthru
          _
        // Predicated region
        $region81: #{tpu_custom_call.1} parent=55 // pred_check
          %p435 = pneg %p184
        $region82: #{tpu_custom_call.1} parent=55 // pred_check_branch
          %437 = sbr.rel (%p435) target = $region84
        $region83: #{tpu_custom_call.1} parent=55 // pred_region
          %439 = dma.done [#allocation16], 128
        $region84: #{tpu_custom_call.1} parent=55 // pred_fallthru
          _
        // Predicated region
        $region85: #{tpu_custom_call.1} parent=55 // pred_check
          %p440 = pneg %p205
        $region86: #{tpu_custom_call.1} parent=55 // pred_check_branch
          %442 = sbr.rel (%p440) target = $region88
        $region87: #{tpu_custom_call.1} parent=55 // pred_region
          %444 = dma.done [#allocation16], 512
        $region88: #{tpu_custom_call.1} parent=55 // pred_fallthru
          _
        %445 = sfence
        %s446 = sand.u32 %s40, 1
        %s447 = scalar_lea.sflag [#allocation5], %s446
        %s448 = sand.u32 %s40, 1
        %s449 = smul.addr %s448, 8
        %s450 = scalar_lea.vmem [#allocation4], %s449
        %p451 = pneg %p53
        %p452 = pneg %p50
        %s453 = sand.u32 %s32, 1
        %s454 = scalar_lea.sflag [#allocation9], %s453
        %s455 = sand.u32 %s66, 1
        %s456 = smul.addr %s455, 8
        %s457 = scalar_lea.vmem [#allocation8], %s456
        %p458 = pneg %p79
        %p459 = pneg %p76
        %p460 = pneg %p100
        %p461 = pneg %p97
        %p462 = pneg %p121
        %p463 = pneg %p118
        %p464 = pneg %p142
        %p465 = pneg %p139
        %p466 = pneg %p163
        %p467 = pneg %p160
        %p468 = pneg %p184
        %p469 = pneg %p181
        %p470 = pneg %p205
        %p471 = pneg %p202
        %p472 = pneg %p226
        %p473 = pneg %p223
        %p474 = pneg %p252
        %p475 = pneg %p249
        %s476 = sand.u32 %s239, 1
        %s477 = scalar_lea.sflag [#allocation6], %s476
        %s478 = sand.u32 %s239, 1
        %s479 = smul.addr %s478, 8
        %s480 = scalar_lea.vmem [#allocation18], %s479
        %v481 = vld [vmem:[%s409] sm:$0xff]
        %v482 = vld [vmem:[%s399] sm:$0xff]
        %v483 = vld [vmem:[#allocation11] sm:$0xff]
        %v484 = vld [vmem:[#allocation11 + $0x8] sm:$0xff]
        %v485 = vld [vmem:[#allocation12] sm:$0x3f]
        %vm486 = vcmask 130048
        %v488 = vsel %vm486, %v482, 0
        %490 = vmatpush.msra.mxu0 0.0
        %491 = vmatpush.msra.mxu0 0.0
        %492 = vmatpush.msra.mxu0 0.0
        %493 = vmatpush.msra.mxu0 0.0
        %494 = vmatpush.msra.mxu0 0.0
        %495 = vmatpush.msra.mxu0 0.0
        %496 = vmatpush.msra.mxu0 0.0
        %497 = vmatpush.msra.mxu0 0.0
        %498 = vmatpush.msra.mxu0 0.0
        %499 = vmatpush.msra.mxu0 0.0
        %500 = vmatpush.msra.mxu0 0.0
        %501 = vmatpush.msra.mxu0 0.0
        %502 = vmatpush.msra.mxu0 0.0
        %503 = vmatpush.msra.mxu0 0.0
        %504 = vmatpush.msra.mxu0 %v484
        %505 = vmatpush.msra.mxu0 %v483
        %506 = vmatmul.f32.gmra.mxu0 %v488
        %v507 = vpop.f32.mrf.mxu0
        %v508 = vadd.f32 0.0, %v507
        %509 = vdwg.mxu0
        %v510 = vperm.slane %v485, 3
        %512 = vrot.lane.b32.xlu0 %v510, 32
        %v513 = vpop.permute.xlu0 %512
        %v515 = vadd.f32 %v508, %v513
        %v516 = vmul.f32 %v515, 0.5
        %v517 = vmul.f32 %v515, 0.044715
        %v518 = vmul.f32 %v517, %v515
        %v519 = vmul.f32 %v518, %v515
        %v520 = vadd.f32 %v515, %v519
        %v521 = vmul.f32 %v520, 0.7978846
        %v522 = vtanh.pop %v521
        %v523 = vadd.f32 %v522, 1.0
        %v524 = vmul.f32 %v516, %v523
        %526 = vrot.lane.b32.xlu0 %v524, 96
        %v527 = vpop.permute.xlu0 %526
        %vm529 = vcmask 261120
        %v530 = vsel %vm529, %v527, 0.0
        %531 = vadd.xlane.f32.xlu0 %v530
        %v532 = vpop.xlane.xlu0 %531
        %v533 = vrcp.pop 32.0
        %v534 = vmul.f32 32.0, %v533
        %v535 = vsub.f32 1.0, %v534
        %v536 = vmul.f32 %v533, %v535
        %v537 = vadd.f32 %v533, %v536
        %vm538 = vweird.f32 %v533
        %v539 = vsel %vm538, %v533, %v537
        %v540 = vmul.f32 %v532, %v539
        %v541 = vsub.f32 %v524, %v540
        %v542 = vmul.f32 %v541, %v541
        %544 = vrot.lane.b32.xlu0 %v542, 96
        %v545 = vpop.permute.xlu0 %544
        %v547 = vsel %vm529, %v545, 0.0
        %548 = vadd.xlane.f32.xlu0 %v547
        %v549 = vpop.xlane.xlu0 %548
        %v550 = vmul.f32 %v549, %v539
        %v551 = vadd.f32 %v550, 1e-05
        %v552 = vrsqrt.pop %v551
        %v553 = vmul.f32 %v552, %v551
        %v554 = vmul.f32 %v553, %v552
        %v555 = vmul.f32 0.5, %v554
        %v556 = vsub.f32 1.5, %v555
        %v557 = vmul.f32 %v552, %v556
        %vm558 = vweird.f32 %v551
        %vm559 = vweird.f32 %v552
        %vm560 = vmor %vm558, %vm559
        %v561 = vsel %vm560, %v552, %v557
        %v562 = vmul.f32 %v541, %v561
        %v563 = vperm.slane %v485, 4
        %565 = vrot.lane.b32.xlu0 %v563, 32
        %v566 = vpop.permute.xlu0 %565
        %v568 = vmul.f32 %v562, %v566
        %v569 = vperm.slane %v485, 5
        %571 = vrot.lane.b32.xlu0 %v569, 32
        %v572 = vpop.permute.xlu0 %571
        %v574 = vadd.f32 %v568, %v572
        %576 = vrot.lane.b32.xlu0 %v574, 96
        %v577 = vpop.permute.xlu0 %576
        %579 = vst.msk [vmem:[#allocation2] sm:$0xff] %vm529, %v577
        %581 = vset.pattern.permute.xlu0 0
        %582 = vperm.xlu0 %581, %v481
        %v583 = vpop.permute.xlu0 %582
        %v585 = vperm.slane %v508, 0
        %v586 = vmul.f32 %v583, %v585
        %587 = vset.pattern.permute.xlu0 1
        %588 = vperm.xlu0 %587, %v481
        %v589 = vpop.permute.xlu0 %588
        %v591 = vperm.slane %v508, 1
        %v592 = vmul.f32 %v589, %v591
        %v593 = vadd.f32 %v586, %v592
        %594 = vset.pattern.permute.xlu0 2
        %595 = vperm.xlu0 %594, %v481
        %v596 = vpop.permute.xlu0 %595
        %v598 = vperm.slane %v508, 2
        %v599 = vmul.f32 %v596, %v598
        %v600 = vadd.f32 %v593, %v599
        %601 = vset.pattern.permute.xlu0 3
        %602 = vperm.xlu0 %601, %v481
        %v603 = vpop.permute.xlu0 %602
        %v605 = vperm.slane %v508, 3
        %v606 = vmul.f32 %v603, %v605
        %v607 = vadd.f32 %v600, %v606
        %608 = vset.pattern.permute.xlu0 4
        %609 = vperm.xlu0 %608, %v481
        %v610 = vpop.permute.xlu0 %609
        %v612 = vperm.slane %v508, 4
        %v613 = vmul.f32 %v610, %v612
        %v614 = vadd.f32 %v607, %v613
        %615 = vset.pattern.permute.xlu0 5
        %616 = vperm.xlu0 %615, %v481
        %v617 = vpop.permute.xlu0 %616
        %v619 = vperm.slane %v508, 5
        %v620 = vmul.f32 %v617, %v619
        %v621 = vadd.f32 %v614, %v620
        %622 = vset.pattern.permute.xlu0 6
        %623 = vperm.xlu0 %622, %v481
        %v624 = vpop.permute.xlu0 %623
        %v626 = vperm.slane %v508, 6
        %v627 = vmul.f32 %v624, %v626
        %v628 = vadd.f32 %v621, %v627
        %629 = vset.pattern.permute.xlu0 7
        %630 = vperm.xlu0 %629, %v481
        %v631 = vpop.permute.xlu0 %630
        %v633 = vperm.slane %v508, 7
        %v634 = vmul.f32 %v631, %v633
        %v635 = vadd.f32 %v628, %v634
        %s636 = sld [smem:[#allocation10]]
        %s637 = sadd.f32 %s636, 1.0
        %v638 = vstv %s637
        %v639 = vmul.f32 %v638, %v635
        %v640 = vadd.f32 %v508, %v639
        %v641 = vperm.slane %v485, 0
        %v642 = vadd.f32 %v640, %v641
        %v643 = vmul.f32 %v642, 0.5
        %v644 = vmul.f32 %v642, 0.044715
        %v645 = vmul.f32 %v644, %v642
        %v646 = vmul.f32 %v645, %v642
        %v647 = vadd.f32 %v642, %v646
        %v648 = vmul.f32 %v647, 0.7978846
        %v649 = vtanh.pop %v648
        %v650 = vadd.f32 %v649, 1.0
        %v651 = vmul.f32 %v643, %v650
        %v652 = vsel %vm529, %v651, 0.0
        %653 = vadd.xlane.f32.xlu0 %v652
        %v654 = vpop.xlane.xlu0 %653
        %v655 = vmul.f32 %v654, %v539
        %v656 = vsub.f32 %v651, %v655
        %v657 = vmul.f32 %v656, %v656
        %v658 = vsel %vm529, %v657, 0.0
        %659 = vadd.xlane.f32.xlu0 %v658
        %v660 = vpop.xlane.xlu0 %659
        %v661 = vmul.f32 %v660, %v539
        %v662 = vadd.f32 %v661, 1e-05
        %v663 = vrsqrt.pop %v662
        %v664 = vmul.f32 %v663, %v662
        %v665 = vmul.f32 %v664, %v663
        %v666 = vmul.f32 0.5, %v665
        %v667 = vsub.f32 1.5, %v666
        %v668 = vmul.f32 %v663, %v667
        %vm669 = vweird.f32 %v662
        %vm670 = vweird.f32 %v663
        %vm671 = vmor %vm669, %vm670
        %v672 = vsel %vm671, %v663, %v668
        %v673 = vmul.f32 %v656, %v672
        %v674 = vperm.slane %v485, 1
        %v675 = vmul.f32 %v673, %v674
        %v676 = vperm.slane %v485, 2
        %v677 = vadd.f32 %v675, %v676
        %678 = vst.msk [vmem:[#allocation3] sm:$0xff] %vm529, %v677
        %v679 = vld [vmem:[#allocation3] sm:$0xff]
        %v680 = vld [vmem:[#allocation14] sm:$0xff]
        %v681 = vld [vmem:[#allocation14 + $0x8] sm:$0xff]
        %v682 = vld [vmem:[#allocation14 + $0x10] sm:$0xff]
        %v683 = vld [vmem:[#allocation14 + $0x18] sm:$0xff]
        %v684 = vld [vmem:[#allocation15] sm:$0x3f]
        %v686 = vsel %vm529, %v679, 0
        %688 = vmatpush.msra.mxu0 0.0
        %689 = vmatpush.msra.mxu0 0.0
        %690 = vmatpush.msra.mxu0 0.0
        %691 = vmatpush.msra.mxu0 0.0
        %692 = vmatpush.msra.mxu0 0.0
        %693 = vmatpush.msra.mxu0 0.0
        %694 = vmatpush.msra.mxu0 0.0
        %695 = vmatpush.msra.mxu0 0.0
        %696 = vmatpush.msra.mxu0 0.0
        %697 = vmatpush.msra.mxu0 0.0
        %698 = vmatpush.msra.mxu0 0.0
        %699 = vmatpush.msra.mxu0 0.0
        %700 = vmatpush.msra.mxu0 %v683
        %701 = vmatpush.msra.mxu0 %v682
        %702 = vmatpush.msra.mxu0 %v681
        %703 = vmatpush.msra.mxu0 %v680
        %704 = vmatmul.f32.gmra.mxu0 %v686
        %v705 = vpop.f32.mrf.mxu0
        %v706 = vadd.f32 0.0, %v705
        %707 = vdwg.mxu0
        %v708 = vperm.slane %v684, 3
        %710 = vrot.lane.b32.xlu0 %v708, 32
        %v711 = vpop.permute.xlu0 %710
        %v713 = vadd.f32 %v706, %v711
        %v714 = vmul.f32 %v713, 0.5
        %v715 = vmul.f32 %v713, 0.044715
        %v716 = vmul.f32 %v715, %v713
        %v717 = vmul.f32 %v716, %v713
        %v718 = vadd.f32 %v713, %v717
        %v719 = vmul.f32 %v718, 0.7978846
        %v720 = vtanh.pop %v719
        %v721 = vadd.f32 %v720, 1.0
        %v722 = vmul.f32 %v714, %v721
        %724 = vrot.lane.b32.xlu0 %v722, 96
        %v725 = vpop.permute.xlu0 %724
        %v727 = vsel %vm529, %v725, 0.0
        %728 = vadd.xlane.f32.xlu0 %v727
        %v729 = vpop.xlane.xlu0 %728
        %v730 = vmul.f32 %v729, %v539
        %v731 = vsub.f32 %v722, %v730
        %v732 = vmul.f32 %v731, %v731
        %734 = vrot.lane.b32.xlu0 %v732, 96
        %v735 = vpop.permute.xlu0 %734
        %v737 = vsel %vm529, %v735, 0.0
        %738 = vadd.xlane.f32.xlu0 %v737
        %v739 = vpop.xlane.xlu0 %738
        %v740 = vmul.f32 %v739, %v539
        %v741 = vadd.f32 %v740, 1e-05
        %v742 = vrsqrt.pop %v741
        %v743 = vmul.f32 %v742, %v741
        %v744 = vmul.f32 %v743, %v742
        %v745 = vmul.f32 0.5, %v744
        %v746 = vsub.f32 1.5, %v745
        %v747 = vmul.f32 %v742, %v746
        %vm748 = vweird.f32 %v741
        %vm749 = vweird.f32 %v742
        %vm750 = vmor %vm748, %vm749
        %v751 = vsel %vm750, %v742, %v747
        %v752 = vmul.f32 %v731, %v751
        %v753 = vperm.slane %v684, 4
        %755 = vrot.lane.b32.xlu0 %v753, 32
        %v756 = vpop.permute.xlu0 %755
        %v758 = vmul.f32 %v752, %v756
        %v759 = vperm.slane %v684, 5
        %761 = vrot.lane.b32.xlu0 %v759, 32
        %v762 = vpop.permute.xlu0 %761
        %v764 = vadd.f32 %v758, %v762
        %v765 = vld [vmem:[#allocation2] sm:$0xff]
        %767 = vrot.lane.b32.xlu0 %v764, 96
        %v768 = vpop.permute.xlu0 %767
        %v770 = vadd.f32 %v765, %v768
        %771 = vst.msk [vmem:[#allocation2] sm:$0xff] %vm529, %v770
        %v772 = vperm.slane %v706, 0
        %v773 = vmul.f32 %v583, %v772
        %v774 = vperm.slane %v706, 1
        %v775 = vmul.f32 %v589, %v774
        %v776 = vadd.f32 %v773, %v775
        %v777 = vperm.slane %v706, 2
        %v778 = vmul.f32 %v596, %v777
        %v779 = vadd.f32 %v776, %v778
        %v780 = vperm.slane %v706, 3
        %v781 = vmul.f32 %v603, %v780
        %v782 = vadd.f32 %v779, %v781
        %v783 = vperm.slane %v706, 4
        %v784 = vmul.f32 %v610, %v783
        %v785 = vadd.f32 %v782, %v784
        %v786 = vperm.slane %v706, 5
        %v787 = vmul.f32 %v617, %v786
        %v788 = vadd.f32 %v785, %v787
        %v789 = vperm.slane %v706, 6
        %v790 = vmul.f32 %v624, %v789
        %v791 = vadd.f32 %v788, %v790
        %v792 = vperm.slane %v706, 7
        %v793 = vmul.f32 %v631, %v792
        %v794 = vadd.f32 %v791, %v793
        %s795 = sld [smem:[#allocation10 + $0x1]]
        %s796 = sadd.f32 %s795, 1.0
        %v797 = vstv %s796
        %v798 = vmul.f32 %v797, %v794
        %v799 = vadd.f32 %v706, %v798
        %v800 = vperm.slane %v684, 0
        %v801 = vadd.f32 %v799, %v800
        %v802 = vmul.f32 %v801, 0.5
        %v803 = vmul.f32 %v801, 0.044715
        %v804 = vmul.f32 %v803, %v801
        %v805 = vmul.f32 %v804, %v801
        %v806 = vadd.f32 %v801, %v805
        %v807 = vmul.f32 %v806, 0.7978846
        %v808 = vtanh.pop %v807
        %v809 = vadd.f32 %v808, 1.0
        %v810 = vmul.f32 %v802, %v809
        %v811 = vsel %vm529, %v810, 0.0
        %812 = vadd.xlane.f32.xlu0 %v811
        %v813 = vpop.xlane.xlu0 %812
        %v814 = vmul.f32 %v813, %v539
        %v815 = vsub.f32 %v810, %v814
        %v816 = vmul.f32 %v815, %v815
        %v817 = vsel %vm529, %v816, 0.0
        %818 = vadd.xlane.f32.xlu0 %v817
        %v819 = vpop.xlane.xlu0 %818
        %v820 = vmul.f32 %v819, %v539
        %v821 = vadd.f32 %v820, 1e-05
        %v822 = vrsqrt.pop %v821
        %v823 = vmul.f32 %v822, %v821
        %v824 = vmul.f32 %v823, %v822
        %v825 = vmul.f32 0.5, %v824
        %v826 = vsub.f32 1.5, %v825
        %v827 = vmul.f32 %v822, %v826
        %vm828 = vweird.f32 %v821
        %vm829 = vweird.f32 %v822
        %vm830 = vmor %vm828, %vm829
        %v831 = vsel %vm830, %v822, %v827
        %v832 = vmul.f32 %v815, %v831
        %v833 = vperm.slane %v684, 1
        %v834 = vmul.f32 %v832, %v833
        %v835 = vperm.slane %v684, 2
        %v836 = vadd.f32 %v834, %v835
        %837 = vst.msk [vmem:[#allocation3] sm:$0xff] %vm529, %v836
        %v838 = vld [vmem:[#allocation17] sm:$0xff]
        %v839 = vld [vmem:[#allocation17 + $0x8] sm:$0xff]
        %v840 = vld [vmem:[#allocation17 + $0x10] sm:$0xff]
        %v841 = vld [vmem:[#allocation17 + $0x18] sm:$0xff]
        %v842 = vld [vmem:[%s8] sm:$0x7]
        %v843 = vld [vmem:[#allocation3] sm:$0xff]
        %v844 = vld [vmem:[#allocation2] sm:$0xff]
        %v845 = vperm.slane %v842, 0
        %v847 = vsel %vm529, %v843, 0
        %849 = vmatpush.msra.mxu0 0.0
        %850 = vmatpush.msra.mxu0 0.0
        %851 = vmatpush.msra.mxu0 0.0
        %852 = vmatpush.msra.mxu0 0.0
        %853 = vmatpush.msra.mxu0 0.0
        %854 = vmatpush.msra.mxu0 0.0
        %855 = vmatpush.msra.mxu0 0.0
        %856 = vmatpush.msra.mxu0 0.0
        %857 = vmatpush.msra.mxu0 0.0
        %858 = vmatpush.msra.mxu0 0.0
        %859 = vmatpush.msra.mxu0 0.0
        %860 = vmatpush.msra.mxu0 0.0
        %861 = vmatpush.msra.mxu0 %v841
        %862 = vmatpush.msra.mxu0 %v840
        %863 = vmatpush.msra.mxu0 %v839
        %864 = vmatpush.msra.mxu0 %v838
        %865 = vmatmul.f32.gmra.mxu0 %v847
        %v866 = vpop.f32.mrf.mxu0
        %v867 = vadd.f32 %v845, %v866
        %868 = vdwg.mxu0
        %v869 = vmul.f32 %v867, 0.5
        %v870 = vmul.f32 %v867, 0.044715
        %v871 = vmul.f32 %v870, %v867
        %v872 = vmul.f32 %v871, %v867
        %v873 = vadd.f32 %v867, %v872
        %v874 = vmul.f32 %v873, 0.7978846
        %v875 = vtanh.pop %v874
        %v876 = vadd.f32 %v875, 1.0
        %v877 = vmul.f32 %v869, %v876
        %v878 = vsel %vm529, %v877, 0.0
        %879 = vadd.xlane.f32.xlu0 %v878
        %v880 = vpop.xlane.xlu0 %879
        %v881 = vmul.f32 %v880, %v539
        %v882 = vsub.f32 %v877, %v881
        %v883 = vmul.f32 %v882, %v882
        %v884 = vsel %vm529, %v883, 0.0
        %885 = vadd.xlane.f32.xlu0 %v884
        %v886 = vpop.xlane.xlu0 %885
        %v887 = vmul.f32 %v886, %v539
        %v888 = vadd.f32 %v887, 1e-05
        %v889 = vrsqrt.pop %v888
        %v890 = vmul.f32 %v889, %v888
        %v891 = vmul.f32 %v890, %v889
        %v892 = vmul.f32 0.5, %v891
        %v893 = vsub.f32 1.5, %v892
        %v894 = vmul.f32 %v889, %v893
        %vm895 = vweird.f32 %v888
        %vm896 = vweird.f32 %v889
        %vm897 = vmor %vm895, %vm896
        %v898 = vsel %vm897, %v889, %v894
        %v899 = vmul.f32 %v882, %v898
        %v900 = vperm.slane %v842, 1
        %v901 = vmul.f32 %v899, %v900
        %v902 = vperm.slane %v842, 2
        %v903 = vadd.f32 %v901, %v902
        %v904 = vadd.f32 %v844, %v903
        %905 = vst.msk [vmem:[#allocation2] sm:$0xff] %vm529, %v904
        %v906 = vld [vmem:[#allocation2] sm:$0xff]
        %907 = vst.msk [vmem:[%s480] sm:$0xff] %vm529, %v906
        %s908 = sand.u32 %s239, 1
        %s909 = scalar_lea.sflag [#allocation6], %s908
        %s910 = sand.u32 %s239, 1
        %s911 = smul.addr %s910, 8
        %s912 = scalar_lea.vmem [#allocation18], %s911
        // Predicated region
        $region89: #{tpu_custom_call.1} parent=55 // pred_check
          %p913 = pneg %p249
        $region90: #{tpu_custom_call.1} parent=55 // pred_check_branch
          %915 = sbr.rel (%p913) target = $region92
        $region91: #{tpu_custom_call.1} parent=55 // pred_region
          %917 = vsyncadd %s909, 0
          %s918 = smul.addr %s32, 8
          %s919 = scalar_lea.hbm %s9, %s918
          %s921 = sshll.u32 %s912, 4
          %s922 = int_to_ptr.vmem [resolvable:$true] %s921
          %s923 = sshll.u32 %s919, 4
          %s924 = int_to_ptr.hbm [resolvable:$true] %s923
          %926 = dma.vmem_to_hbm [thread:$0]  %s922, 128, %s924, %s909
        $region92: #{tpu_custom_call.1} parent=55 // pred_fallthru
          _
      $region56: #{tpu_custom_call.1} parent=5 // pred_fallthru
        _
      %p927 = scmp.le.s32.totalorder 2, %s27
      // Predicated region
      $region93: #{tpu_custom_call.1} parent=5 // pred_check
        %p928 = pneg %p927
      $region94: #{tpu_custom_call.1} parent=5 // pred_check_branch
        %930 = sbr.rel (%p928) target = $region96
      $region95: #{tpu_custom_call.1} parent=5 // pred_region
        %s931 = ssub.s32 %s27, 2
        // Predicated region
        $region97: #{tpu_custom_call.1} parent=95 // pred_check
          %p932 = pneg %p255
        $region98: #{tpu_custom_call.1} parent=95 // pred_check_branch
          %934 = sbr.rel (%p932) target = $region100
        $region99: #{tpu_custom_call.1} parent=95 // pred_region
          %s935 = sand.u32 %s240, 1
          %s936 = scalar_lea.sflag [#allocation6], %s935
          %s937 = sand.u32 %s240, 1
          %s938 = smul.addr %s937, 8
          %s939 = scalar_lea.vmem [#allocation18], %s938
          %941 = dma.done %s936, 128
        $region100: #{tpu_custom_call.1} parent=95 // pred_fallthru
          _
      $region96: #{tpu_custom_call.1} parent=5 // pred_fallthru
        _
    $region6: #{tpu_custom_call.1} parent=1 // loop_footer
      %s31 = sadd.s32 1, %s27
    $region7: #{tpu_custom_call.1} parent=1 // loop_footer_branch
      %26 = sbr.rel target = $region3
    $region8: #{tpu_custom_call.1} parent=1 // loop_exit
      _
    %942 = vsyncpa [#allocation5], 1
    %s943 = scalar_lea.sflag [#allocation5], 1
    %944 = vsyncpa %s943, 1
    %945 = vsyncpa [#allocation9], 1
    %s946 = scalar_lea.sflag [#allocation9], 1
    %947 = vsyncpa %s946, 1
    %948 = vsyncpa [#allocation13], 1
    %949 = vsyncpa [#allocation16], 1
    %950 = vsyncpa [#allocation6], 1
    %s951 = scalar_lea.sflag [#allocation6], 1
    %952 = vsyncpa %s951, 1
    %953 = vsyncpa [#allocation7], 1
    %s954 = scalar_lea.sflag [#allocation7], 1
    %955 = vsyncpa %s954, 1

</llo_original>
